<compile_context>
chip_gen: v6e
topology: v6e:2x2x1
jax: 0.10.0
libtpu: 0.0.40
codegen_flags: <defaults>
</compile_context>

<pallas_src>
import functools

import jax
import jax.numpy as jnp
from jax.experimental import pallas as pl
from jax.experimental.pallas import tpu as pltpu

IN_FEATURES = 512       # "unknown model type" default branch of SimYOLOv8.__init__
OUT_FEATURES = 256
HIDDEN_DIM = OUT_FEATURES * 2   # 512
BN_EPS = 1e-5


# ----------------------------- Pallas kernel --------------------------------
def _mlp_head_kernel(x_ref, w1_ref, g1_ref, b1_ref, w2_ref, b2_ref,
                     out_ref, acc_ref, *, inv_hw):
    """One (view, hw-tile) grid step of the projection head.

    grid   = (n_views, n_hw_tiles); the HW axis is a streamed reduction.
    x_ref  : (1, N, hw_tile, C)   channels-last feature tile for this view
    w1_ref : (C, HIDDEN)          Linear #1 (no bias)   -- VMEM-resident
    g1_ref : (1, HIDDEN)          BatchNorm1d(hidden) gamma
    b1_ref : (1, HIDDEN)          BatchNorm1d(hidden) beta
    w2_ref : (HIDDEN, OUT)        Linear #2 weight
    b2_ref : (1, OUT)             Linear #2 bias
    out_ref: (1, N, OUT)
    acc_ref: (N, C) f32 scratch   running spatial sum for the current view
    """
    hw_step = pl.program_id(1)

    @pl.when(hw_step == 0)
    def _():
        acc_ref[...] = jnp.zeros_like(acc_ref)

    # Partial spatial sum for this HW tile (upcast is a no-op for f32 inputs,
    # keeps the kernel correct if bf16 features are fed in later).
    x = x_ref[0].astype(jnp.float32)            # (N, hw_tile, C)
    acc_ref[...] += jnp.sum(x, axis=1)          # (N, C)

    @pl.when(hw_step == pl.num_programs(1) - 1)
    def _():
        # AdaptiveAvgPool2d((1,1)) + Flatten : finished spatial mean.
        pooled = acc_ref[...] * inv_hw                                  # (N, C)

        # Linear(in_features, hidden_dim, bias=False)
        z1 = jnp.dot(pooled, w1_ref[...],
                     preferred_element_type=jnp.float32)                # (N, HIDDEN)

        # BatchNorm1d(hidden_dim), training mode: biased per-call batch stats
        # (computed over this view only).
        mu1 = jnp.mean(z1, axis=0, keepdims=True)
        var1 = jnp.mean(z1 * z1, axis=0, keepdims=True) - mu1 * mu1
        z1n = (z1 - mu1) * jax.lax.rsqrt(var1 + BN_EPS)
        z1n = z1n * g1_ref[...] + b1_ref[...]

        # nn.GELU() default = exact (erf-based) GELU; kept for PyTorch parity.
        g = 0.5 * z1n * (1.0 + jax.lax.erf(z1n * 0.7071067811865476))

        # Linear(hidden_dim, out_features, bias=True)
        z2 = jnp.dot(g, w2_ref[...],
                     preferred_element_type=jnp.float32) + b2_ref[...]  # (N, OUT)

        # BatchNorm1d(out_features, affine=False), training mode.
        mu2 = jnp.mean(z2, axis=0, keepdims=True)
        var2 = jnp.mean(z2 * z2, axis=0, keepdims=True) - mu2 * mu2
        out_ref[0] = (z2 - mu2) * jax.lax.rsqrt(var2 + BN_EPS)


def _pick_hw_tile(hw, n, c, itemsize=4, target_bytes=2 << 20):
    """Largest multiple of 8 dividing HW whose (n, tile, c) block stays under
    `target_bytes` (double-buffered it still fits the v5e 16 MiB scoped VMEM
    default together with the ~3 MiB of resident weights)."""
    if hw % 8 != 0:
        return hw                       # irregular HW -> single full block
    max_tile = max(8, (target_bytes // (n * c * itemsize)) // 8 * 8)
    best, t = 8, 8
    while t <= min(hw, max_tile):
        if hw % t == 0:
            best = t
        t += 8
    return best


def mlp_head_pair(h_views, params):
    """Projection head on a stack of views.

    h_views : (V, N, H, W, C) channels-last backbone features.
    returns : (V, N, OUT_FEATURES); BN statistics computed independently per view.
    """
    v, n, hh, ww, c = h_views.shape
    hw = hh * ww
    x = h_views.reshape(v, n, hw, c)

    hw_tile = _pick_hw_tile(hw, n, c)
    n_hw = hw // hw_tile

    kernel = functools.partial(_mlp_head_kernel, inv_hw=1.0 / hw)

    def resident(shape):
        # Same block for every grid point -> weight DMA'd once, stays in VMEM.
        return pl.BlockSpec(shape, lambda vi, ki, _s=len(shape): (0,) * _s)

    return pl.pallas_call(
        kernel,
        out_shape=jax.ShapeDtypeStruct((v, n, OUT_FEATURES), jnp.float32),
        grid_spec=pltpu.PrefetchScalarGridSpec(
            num_scalar_prefetch=0,
            grid=(v, n_hw),
            in_specs=[
                pl.BlockSpec((1, n, hw_tile, c), lambda vi, ki: (vi, 0, ki, 0)),
                resident((c, HIDDEN_DIM)),
                resident((1, HIDDEN_DIM)),
                resident((1, HIDDEN_DIM)),
                resident((HIDDEN_DIM, OUT_FEATURES)),
                resident((1, OUT_FEATURES)),
            ],
            out_specs=pl.BlockSpec((1, n, OUT_FEATURES), lambda vi, ki: (vi, 0, 0)),
            scratch_shapes=[pltpu.VMEM((n, c), jnp.float32)],
        ),
        compiler_params=pltpu.CompilerParams(
            # view axis shards across TensorCores on v7x; HW axis is a reduction.
            dimension_semantics=("parallel", "arbitrary"),
        ),
    )(x, params["w1"], params["bn1_gamma"], params["bn1_beta"],
      params["w2"], params["b2"])


# --------------------------- stand-in submodules -----------------------------
PATCH = 8  # backbone stand-in: 8x8 patch embedding (32x32 image -> 4x4 grid)


def backbone_stub(x_nchw, params):
    # TODO(synk): the YOLOv8 backbone is an external module not defined in the
    # source; deterministic patch-embedding stand-in. Returns channels-last
    # (N, H/8, W/8, 512) features so the head kernel needs no NCHW<->NHWC
    # layout round trip.
    n, c, hh, ww = x_nchw.shape
    gh, gw = hh // PATCH, ww // PATCH
    p = x_nchw.reshape(n, c, gh, PATCH, gw, PATCH)
    p = jnp.transpose(p, (0, 2, 4, 1, 3, 5)).reshape(n, gh, gw, c * PATCH * PATCH)
    return jnp.einsum("nhwp,pf->nhwf", p, params["wb"])     # (N, gh, gw, 512)


def augmentation_stub(x_nchw, which):
    # TODO(synk): augmentation is an external (stochastic) module; using two
    # fixed deterministic views: identity and horizontal flip.
    return x_nchw if which == 0 else jnp.flip(x_nchw, axis=-1)


# ------------------------------- forward -------------------------------------
@functools.partial(jax.jit, static_argnames=("train",))
def sim_yolov8_forward(x, params, train=True):
    if train:
        n = x.shape[0]
        augm_1 = augmentation_stub(x, 0)
        augm_2 = augmentation_stub(x, 1)
        # One backbone pass over both views batched as (2N, ...); the leading-
        # axis reshape to (2, N, ...) is free -> no jnp.stack HBM copy feeding
        # the Pallas head.
        x_pair = jnp.concatenate([augm_1, augm_2], axis=0)        # (2N, C, H, W)
        h_pair = backbone_stub(x_pair, params)                    # (2N, gh, gw, 512)
        h_pair = h_pair.reshape((2, n) + h_pair.shape[1:])        # (2, N, gh, gw, 512)
        # Single Pallas call for both views: shared weights, per-view BN stats.
        compact = mlp_head_pair(h_pair, params)                   # (2, N, 256)
        return h_pair[0], h_pair[1], compact[0], compact[1]
    else:
        return backbone_stub(x, params)


def init_params(key):
    k0, k1, k2, k3 = jax.random.split(key, 4)
    patch_dim = 3 * PATCH * PATCH
    return {
        # backbone stand-in patch embedding
        "wb": jax.random.normal(k0, (patch_dim, IN_FEATURES), jnp.float32) * 0.05,
        # Linear(in_features, hidden_dim, bias=False)
        "w1": jax.random.normal(k1, (IN_FEATURES, HIDDEN_DIM), jnp.float32) * 0.02,
        # BatchNorm1d(hidden_dim) affine params (PyTorch default init)
        "bn1_gamma": jnp.ones((1, HIDDEN_DIM), jnp.float32),
        "bn1_beta": jnp.zeros((1, HIDDEN_DIM), jnp.float32),
        # Linear(hidden_dim, out_features, bias=True)
        "w2": jax.random.normal(k2, (HIDDEN_DIM, OUT_FEATURES), jnp.float32) * 0.02,
        "b2": jax.random.normal(k3, (1, OUT_FEATURES), jnp.float32) * 0.01,
    }


if __name__ == "__main__":
    key = jax.random.PRNGKey(0)
    kp, kx = jax.random.split(key)
    params = init_params(kp)

    # small image batch: (N=2, C=3, H=32, W=32) -> backbone features (2, 4, 4, 512)
    x = jax.random.normal(kx, (2, 3, 32, 32), jnp.float32)

    h_1, h_2, compact_h_1, compact_h_2 = sim_yolov8_forward(x, params, train=True)
    jax.block_until_ready((h_1, h_2, compact_h_1, compact_h_2))

    assert h_1.shape == (2, 4, 4, IN_FEATURES)
    assert h_2.shape == (2, 4, 4, IN_FEATURES)
    assert compact_h_1.shape == (2, OUT_FEATURES)
    assert compact_h_2.shape == (2, OUT_FEATURES)
    assert bool(jnp.all(jnp.isfinite(compact_h_1))) and bool(jnp.all(jnp.isfinite(compact_h_2)))
    print("KERNEL_OK")
</pallas_src>

<mosaic_0001>
module attributes {stable_mosaic.version = 11 : i64} {
  func.func @_mlp_head_kernel(%arg0: i32, %arg1: i32, %arg2: memref<1x2x16x512xf32, #tpu.memory_space<vmem>>, %arg3: memref<512x512xf32, #tpu.memory_space<vmem>>, %arg4: memref<1x512xf32, #tpu.memory_space<vmem>>, %arg5: memref<1x512xf32, #tpu.memory_space<vmem>>, %arg6: memref<512x256xf32, #tpu.memory_space<vmem>>, %arg7: memref<1x256xf32, #tpu.memory_space<vmem>>, %arg8: memref<1x2x256xf32, #tpu.memory_space<vmem>>, %arg9: memref<2x512xf32, #tpu.memory_space<vmem>>) attributes {dimension_semantics = [#tpu.dimension_semantics<parallel>, #tpu.dimension_semantics<arbitrary>], iteration_bounds = array<i64: 2, 1>, scalar_prefetch = 0 : i64, scratch_operands = 1 : i64, tpu.core_type = #tpu.core_type<tc>, window_params = [{transform_indices = @transform_0, window_bounds = array<i64: 1, 2, 16, 512>}, {pipeline_mode = #tpu.pipeline_mode<synchronous>, transform_indices = @transform_1, window_bounds = array<i64: 512, 512>}, {pipeline_mode = #tpu.pipeline_mode<synchronous>, transform_indices = @transform_2, window_bounds = array<i64: 1, 512>}, {pipeline_mode = #tpu.pipeline_mode<synchronous>, transform_indices = @transform_3, window_bounds = array<i64: 1, 512>}, {pipeline_mode = #tpu.pipeline_mode<synchronous>, transform_indices = @transform_4, window_bounds = array<i64: 512, 256>}, {pipeline_mode = #tpu.pipeline_mode<synchronous>, transform_indices = @transform_5, window_bounds = array<i64: 1, 256>}, {transform_indices = @transform_6, window_bounds = array<i64: 1, 2, 256>}]} {
    %c0_i32 = arith.constant 0 : i32
    %0 = arith.cmpi eq, %arg1, %c0_i32 : i32
    %1 = arith.extui %0 : i1 to i32
    %c0_i32_0 = arith.constant 0 : i32
    %2 = arith.cmpi ne, %1, %c0_i32_0 : i32
    scf.if %2 {
      %cst_10 = arith.constant 0.000000e+00 : f32
      %12 = vector.broadcast %cst_10 : f32 to vector<2x512xf32>
      %c0_11 = arith.constant 0 : index
      %c0_12 = arith.constant 0 : index
      %13 = vector.load %arg9[%c0_11, %c0_12] : memref<2x512xf32, #tpu.memory_space<vmem>>, vector<2x512xf32>
      tpu.vector_store %arg9[%c0_11, %c0_12], %12 {strides = array<i32>} : memref<2x512xf32, #tpu.memory_space<vmem>>, vector<2x512xf32>,
    } else {
    }
    %c0 = arith.constant 0 : index
    %c0_1 = arith.constant 0 : index
    %c0_2 = arith.constant 0 : index
    %c0_3 = arith.constant 0 : index
    %3 = vector.load %arg2[%c0, %c0_1, %c0_2, %c0_3] : memref<1x2x16x512xf32, #tpu.memory_space<vmem>>, vector<1x2x16x512xf32>
    %4 = vector.shape_cast %3 : vector<1x2x16x512xf32> to vector<2x16x512xf32>
    %c0_4 = arith.constant 0 : index
    %c0_5 = arith.constant 0 : index
    %5 = vector.load %arg9[%c0_4, %c0_5] : memref<2x512xf32, #tpu.memory_space<vmem>>, vector<2x512xf32>
    %cst = arith.constant dense<0.000000e+00> : vector<2x512xf32>
    %6 = vector.multi_reduction <add>, %4, %cst [1] : vector<2x16x512xf32> to vector<2x512xf32>
    %7 = arith.addf %5, %6 : vector<2x512xf32>
    %c0_6 = arith.constant 0 : index
    %c0_7 = arith.constant 0 : index
    %8 = vector.load %arg9[%c0_6, %c0_7] : memref<2x512xf32, #tpu.memory_space<vmem>>, vector<2x512xf32>
    tpu.vector_store %arg9[%c0_6, %c0_7], %7 {strides = array<i32>} : memref<2x512xf32, #tpu.memory_space<vmem>>, vector<2x512xf32>,
    %c0_i32_8 = arith.constant 0 : i32
    %9 = arith.cmpi eq, %arg1, %c0_i32_8 : i32
    %10 = arith.extui %9 : i1 to i32
    %c0_i32_9 = arith.constant 0 : i32
    %11 = arith.cmpi ne, %10, %c0_i32_9 : i32
    scf.if %11 {
      %c0_10 = arith.constant 0 : index
      %c0_11 = arith.constant 0 : index
      %12 = vector.load %arg9[%c0_10, %c0_11] : memref<2x512xf32, #tpu.memory_space<vmem>>, vector<2x512xf32>
      %cst_12 = arith.constant 6.250000e-02 : f32
      %13 = vector.broadcast %cst_12 : f32 to vector<2x512xf32>
      %14 = arith.mulf %12, %13 : vector<2x512xf32>
      %c0_13 = arith.constant 0 : index
      %c0_14 = arith.constant 0 : index
      %15 = vector.load %arg3[%c0_13, %c0_14] : memref<512x512xf32, #tpu.memory_space<vmem>>, vector<512x512xf32>
      %cst_15 = arith.constant dense<0.000000e+00> : vector<2x512xf32>
      %16 = tpu.matmul %14, %15, %cst_15 {dimension_numbers = #tpu.dot_dimension_numbers<[1], [0], [0], [1], [0, 0, 1, 1], [], []>} : vector<2x512xf32>, vector<512x512xf32>, vector<2x512xf32> -> vector<2x512xf32>
      %cst_16 = arith.constant dense<0.000000e+00> : vector<512xf32>
      %17 = vector.multi_reduction <add>, %16, %cst_16 [0] : vector<2x512xf32> to vector<512xf32>
      %18 = vector.shape_cast %17 : vector<512xf32> to vector<1x512xf32>
      %cst_17 = arith.constant 2.000000e+00 : f32
      %19 = vector.broadcast %cst_17 : f32 to vector<1x512xf32>
      %20 = arith.divf %18, %19 : vector<1x512xf32>
      %21 = arith.mulf %16, %16 : vector<2x512xf32>
      %cst_18 = arith.constant dense<0.000000e+00> : vector<512xf32>
      %22 = vector.multi_reduction <add>, %21, %cst_18 [0] : vector<2x512xf32> to vector<512xf32>
      %23 = vector.shape_cast %22 : vector<512xf32> to vector<1x512xf32>
      %cst_19 = arith.constant 2.000000e+00 : f32
      %24 = vector.broadcast %cst_19 : f32 to vector<1x512xf32>
      %25 = arith.divf %23, %24 : vector<1x512xf32>
      %26 = arith.mulf %20, %20 : vector<1x512xf32>
      %27 = arith.subf %25, %26 : vector<1x512xf32>
      %28 = vector.broadcast %20 : vector<1x512xf32> to vector<2x512xf32>
      %29 = arith.subf %16, %28 : vector<2x512xf32>
      %cst_20 = arith.constant 9.99999974E-6 : f32
      %30 = vector.broadcast %cst_20 : f32 to vector<1x512xf32>
      %31 = arith.addf %27, %30 : vector<1x512xf32>
      %32 = math.rsqrt %31 : vector<1x512xf32>
      %33 = vector.broadcast %32 : vector<1x512xf32> to vector<2x512xf32>
      %34 = arith.mulf %29, %33 : vector<2x512xf32>
      %c0_21 = arith.constant 0 : index
      %c0_22 = arith.constant 0 : index
      %35 = vector.load %arg4[%c0_21, %c0_22] : memref<1x512xf32, #tpu.memory_space<vmem>>, vector<1x512xf32>
      %36 = vector.broadcast %35 : vector<1x512xf32> to vector<2x512xf32>
      %37 = arith.mulf %34, %36 : vector<2x512xf32>
      %c0_23 = arith.constant 0 : index
      %c0_24 = arith.constant 0 : index
      %38 = vector.load %arg5[%c0_23, %c0_24] : memref<1x512xf32, #tpu.memory_space<vmem>>, vector<1x512xf32>
      %39 = vector.broadcast %38 : vector<1x512xf32> to vector<2x512xf32>
      %40 = arith.addf %37, %39 : vector<2x512xf32>
      %cst_25 = arith.constant 5.000000e-01 : f32
      %41 = vector.broadcast %cst_25 : f32 to vector<2x512xf32>
      %42 = arith.mulf %41, %40 : vector<2x512xf32>
      %cst_26 = arith.constant 0.707106769 : f32
      %43 = vector.broadcast %cst_26 : f32 to vector<2x512xf32>
      %44 = arith.mulf %40, %43 : vector<2x512xf32>
      %45 = math.erf %44 : vector<2x512xf32>
      %cst_27 = arith.constant 1.000000e+00 : f32
      %46 = vector.broadcast %cst_27 : f32 to vector<2x512xf32>
      %47 = arith.addf %46, %45 : vector<2x512xf32>
      %48 = arith.mulf %42, %47 : vector<2x512xf32>
      %c0_28 = arith.constant 0 : index
      %c0_29 = arith.constant 0 : index
      %49 = vector.load %arg6[%c0_28, %c0_29] : memref<512x256xf32, #tpu.memory_space<vmem>>, vector<512x256xf32>
      %cst_30 = arith.constant dense<0.000000e+00> : vector<2x256xf32>
      %50 = tpu.matmul %48, %49, %cst_30 {dimension_numbers = #tpu.dot_dimension_numbers<[1], [0], [0], [1], [0, 0, 1, 1], [], []>} : vector<2x512xf32>, vector<512x256xf32>, vector<2x256xf32> -> vector<2x256xf32>
      %c0_31 = arith.constant 0 : index
      %c0_32 = arith.constant 0 : index
      %51 = vector.load %arg7[%c0_31, %c0_32] : memref<1x256xf32, #tpu.memory_space<vmem>>, vector<1x256xf32>
      %52 = vector.broadcast %51 : vector<1x256xf32> to vector<2x256xf32>
      %53 = arith.addf %50, %52 : vector<2x256xf32>
      %cst_33 = arith.constant dense<0.000000e+00> : vector<256xf32>
      %54 = vector.multi_reduction <add>, %53, %cst_33 [0] : vector<2x256xf32> to vector<256xf32>
      %55 = vector.shape_cast %54 : vector<256xf32> to vector<1x256xf32>
      %cst_34 = arith.constant 2.000000e+00 : f32
      %56 = vector.broadcast %cst_34 : f32 to vector<1x256xf32>
      %57 = arith.divf %55, %56 : vector<1x256xf32>
      %58 = arith.mulf %53, %53 : vector<2x256xf32>
      %cst_35 = arith.constant dense<0.000000e+00> : vector<256xf32>
      %59 = vector.multi_reduction <add>, %58, %cst_35 [0] : vector<2x256xf32> to vector<256xf32>
      %60 = vector.shape_cast %59 : vector<256xf32> to vector<1x256xf32>
      %cst_36 = arith.constant 2.000000e+00 : f32
      %61 = vector.broadcast %cst_36 : f32 to vector<1x256xf32>
      %62 = arith.divf %60, %61 : vector<1x256xf32>
      %63 = arith.mulf %57, %57 : vector<1x256xf32>
      %64 = arith.subf %62, %63 : vector<1x256xf32>
      %65 = vector.broadcast %57 : vector<1x256xf32> to vector<2x256xf32>
      %66 = arith.subf %53, %65 : vector<2x256xf32>
      %cst_37 = arith.constant 9.99999974E-6 : f32
      %67 = vector.broadcast %cst_37 : f32 to vector<1x256xf32>
      %68 = arith.addf %64, %67 : vector<1x256xf32>
      %69 = math.rsqrt %68 : vector<1x256xf32>
      %70 = vector.broadcast %69 : vector<1x256xf32> to vector<2x256xf32>
      %71 = arith.mulf %66, %70 : vector<2x256xf32>
      %c0_38 = arith.constant 0 : index
      %c0_39 = arith.constant 0 : index
      %c0_40 = arith.constant 0 : index
      %72 = vector.load %arg8[%c0_38, %c0_39, %c0_40] : memref<1x2x256xf32, #tpu.memory_space<vmem>>, vector<1x2x256xf32>
      %73 = vector.shape_cast %72 : vector<1x2x256xf32> to vector<2x256xf32>
      %74 = vector.shape_cast %71 : vector<2x256xf32> to vector<1x2x256xf32>
      tpu.vector_store %arg8[%c0_38, %c0_39, %c0_40], %74 {strides = array<i32>} : memref<1x2x256xf32, #tpu.memory_space<vmem>>, vector<1x2x256xf32>,
    } else {
    }
    return
  }
  func.func @transform_0(%arg0: i32, %arg1: i32) -> (i32, i32, i32, i32) {
    %c0_i32 = arith.constant 0 : i32
    %c0_i32_0 = arith.constant 0 : i32
    %c0_i32_1 = arith.constant 0 : i32
    return %arg0, %c0_i32, %arg1, %c0_i32_0 : i32, i32, i32, i32
  }
  func.func @transform_1(%arg0: i32, %arg1: i32) -> (i32, i32) {
    %c0_i32 = arith.constant 0 : i32
    %c0_i32_0 = arith.constant 0 : i32
    %c0_i32_1 = arith.constant 0 : i32
    return %c0_i32, %c0_i32_0 : i32, i32
  }
  func.func @transform_2(%arg0: i32, %arg1: i32) -> (i32, i32) {
    %c0_i32 = arith.constant 0 : i32
    %c0_i32_0 = arith.constant 0 : i32
    %c0_i32_1 = arith.constant 0 : i32
    return %c0_i32, %c0_i32_0 : i32, i32
  }
  func.func @transform_3(%arg0: i32, %arg1: i32) -> (i32, i32) {
    %c0_i32 = arith.constant 0 : i32
    %c0_i32_0 = arith.constant 0 : i32
    %c0_i32_1 = arith.constant 0 : i32
    return %c0_i32, %c0_i32_0 : i32, i32
  }
  func.func @transform_4(%arg0: i32, %arg1: i32) -> (i32, i32) {
    %c0_i32 = arith.constant 0 : i32
    %c0_i32_0 = arith.constant 0 : i32
    %c0_i32_1 = arith.constant 0 : i32
    return %c0_i32, %c0_i32_0 : i32, i32
  }
  func.func @transform_5(%arg0: i32, %arg1: i32) -> (i32, i32) {
    %c0_i32 = arith.constant 0 : i32
    %c0_i32_0 = arith.constant 0 : i32
    %c0_i32_1 = arith.constant 0 : i32
    return %c0_i32, %c0_i32_0 : i32, i32
  }
  func.func @transform_6(%arg0: i32, %arg1: i32) -> (i32, i32, i32) {
    %c0_i32 = arith.constant 0 : i32
    %c0_i32_0 = arith.constant 0 : i32
    %c0_i32_1 = arith.constant 0 : i32
    return %arg0, %c0_i32, %c0_i32_0 : i32, i32, i32
  }
}

</mosaic_0001>

<llo_original>
// kernel: sim_yolov8_forward.1
$region0: #{sim_yolov8_forward.1}
  #allocation0 [shape = 'u32[]', space=smem, size = 0x4, offset = 0x4, fixed_abs, tag = 'smem constant byte address 0x4 - core index']
  #allocation1 [shape = 'u32[144,128]{1,0:T(1,128)}', space=vmem, size = 0x12000, scoped, tag = 'internal scratch']
  #allocation2 [shape = 'f32[2,512]{1,0:T(2,128)}', space=vmem, size = 0x1000, scoped, tag = 'scratch operand']
  %s0 = inlined_call_operand.vmem [shape: f32[2,2,16,512], index: 0, kind: input, shape index: {}]
  %s1 = inlined_call_operand.vmem [shape: f32[512,512], index: 1, kind: input, shape index: {}]
  %s2 = inlined_call_operand.vmem [shape: f32[1,512], index: 2, kind: input, shape index: {}]
  %s3 = inlined_call_operand.vmem [shape: f32[1,512], index: 3, kind: input, shape index: {}]
  %s4 = inlined_call_operand.vmem [shape: f32[512,256], index: 4, kind: input, shape index: {}]
  %s5 = inlined_call_operand.vmem [shape: f32[1,256], index: 5, kind: input, shape index: {}]
  %s6 = inlined_call_operand.vmem [shape: f32[2,2,256], index: 6, kind: output, shape index: {}]
  %s7 = sld [smem:[#allocation0]]
  $region65: #{sim_yolov8_forward.1} parent=0
    _
  %s9 = ssub.s32 1, %s7
  %s10 = scalar_select 0, %s9, %s7
  loop: start=0, step=1, limit=4
  $region2: #{sim_yolov8_forward.1} parent=0 // loop_pre_header
    _
  $region3: #{sim_yolov8_forward.1} parent=0 // loop_header
    %s12 = sphi 0, %s16
    %p13 = scmp.ge.s32.totalorder %s12, 4
    %s19 = sphi 0, %s31
    %s20 = sphi 0, %s27
    %s21 = sphi 0, %s19
    %s22 = sphi 0, %s20
    %s23 = sphi 0, %s21
    %s24 = sphi 0, %s22
    %s36 = sphi 0, %s38
    %s39 = sphi 0, %s36
    %s40 = sphi 0, %s39
    %s56 = sphi 0, %s40
    %s60 = sphi 0, %s60
    %s62 = sphi 0, %s60
    %s63 = sphi 0, %s62
    %s77 = sphi 0, %s63
    %s81 = sphi 0, %s81
    %s83 = sphi 0, %s81
    %s84 = sphi 0, %s83
    %s98 = sphi 0, %s84
    %s102 = sphi 0, %s102
    %s104 = sphi 0, %s102
    %s105 = sphi 0, %s104
    %s119 = sphi 0, %s105
    %s123 = sphi 0, %s123
    %s125 = sphi 0, %s123
    %s126 = sphi 0, %s125
    %s140 = sphi 0, %s126
    %s144 = sphi 0, %s144
    %s146 = sphi 0, %s144
    %s147 = sphi 0, %s146
    %s161 = sphi 0, %s147
    %s167 = sphi 0, %s169
    %s170 = sphi 0, %s167
    %s171 = sphi 0, %s170
    %s187 = sphi 0, %s171
  $region4: #{sim_yolov8_forward.1} parent=0 // loop_header_branch
    %15 = sbr.rel (%p13) target = $region8
  $region5: #{sim_yolov8_forward.1} parent=0 // loop_body
    %s17 = ssub.s32 %s12, 1
    %s18 = ssub.s32 %s12, 2
    %s25 = sadd.s32 1, %s20
    %p26 = scmp.ge.s32.totalorder %s25, 1
    %s27 = scalar_select %p26, 0, %s25
    %s28 = sadd.s32 1, %s19
    %s29 = scalar_select %p26, %s28, %s19
    %p30 = scmp.ge.s32.totalorder %s29, 2
    %s31 = scalar_select %p30, 0, %s29
    %s32 = ssub.s32 %s19, %s31
    %s33 = ssub.s32 %s20, %s27
    %s34 = sor.u32 %s32, %s33
    %p35 = scmp.eq.s32.totalorder %s34, 0
    %s37 = sadd.s32 %s36, 1
    %s38 = scalar_select %p35, %s36, %s37
    %p41 = pneg %p35
    %p42 = scmp.eq.s32.totalorder %s12, 1
    %p43 = por %p41, %p42
    %p44 = scmp.ne.s32.totalorder %s36, %s39
    %p45 = scmp.eq.s32.totalorder %s12, 0
    %p46 = por %p44, %p45
    %p47 = scmp.ne.s32.totalorder %s36, %s39
    %p48 = scmp.eq.s32.totalorder %s17, 1
    %p49 = por %p47, %p48
    %p50 = scmp.ne.s32.totalorder %s39, %s40
    %p51 = scmp.eq.s32.totalorder %s17, 0
    %p52 = por %p50, %p51
    %p53 = scmp.ne.s32.totalorder %s39, %s40
    %p54 = scmp.eq.s32.totalorder %s18, 1
    %p55 = por %p53, %p54
    %p57 = scmp.ne.s32.totalorder %s40, %s56
    %p58 = scmp.eq.s32.totalorder %s18, 0
    %p59 = por %p57, %p58
    %s61 = sadd.s32 %s60, 1
    %p64 = scmp.eq.s32.totalorder %s12, 1
    %p65 = scmp.ne.s32.totalorder %s60, %s62
    %p66 = scmp.eq.s32.totalorder %s12, 0
    %p67 = por %p65, %p66
    %p68 = scmp.ne.s32.totalorder %s60, %s62
    %p69 = scmp.eq.s32.totalorder %s17, 1
    %p70 = por %p68, %p69
    %p71 = scmp.ne.s32.totalorder %s62, %s63
    %p72 = scmp.eq.s32.totalorder %s17, 0
    %p73 = por %p71, %p72
    %p74 = scmp.ne.s32.totalorder %s62, %s63
    %p75 = scmp.eq.s32.totalorder %s18, 1
    %p76 = por %p74, %p75
    %p78 = scmp.ne.s32.totalorder %s63, %s77
    %p79 = scmp.eq.s32.totalorder %s18, 0
    %p80 = por %p78, %p79
    %s82 = sadd.s32 %s81, 1
    %p85 = scmp.eq.s32.totalorder %s12, 1
    %p86 = scmp.ne.s32.totalorder %s81, %s83
    %p87 = scmp.eq.s32.totalorder %s12, 0
    %p88 = por %p86, %p87
    %p89 = scmp.ne.s32.totalorder %s81, %s83
    %p90 = scmp.eq.s32.totalorder %s17, 1
    %p91 = por %p89, %p90
    %p92 = scmp.ne.s32.totalorder %s83, %s84
    %p93 = scmp.eq.s32.totalorder %s17, 0
    %p94 = por %p92, %p93
    %p95 = scmp.ne.s32.totalorder %s83, %s84
    %p96 = scmp.eq.s32.totalorder %s18, 1
    %p97 = por %p95, %p96
    %p99 = scmp.ne.s32.totalorder %s84, %s98
    %p100 = scmp.eq.s32.totalorder %s18, 0
    %p101 = por %p99, %p100
    %s103 = sadd.s32 %s102, 1
    %p106 = scmp.eq.s32.totalorder %s12, 1
    %p107 = scmp.ne.s32.totalorder %s102, %s104
    %p108 = scmp.eq.s32.totalorder %s12, 0
    %p109 = por %p107, %p108
    %p110 = scmp.ne.s32.totalorder %s102, %s104
    %p111 = scmp.eq.s32.totalorder %s17, 1
    %p112 = por %p110, %p111
    %p113 = scmp.ne.s32.totalorder %s104, %s105
    %p114 = scmp.eq.s32.totalorder %s17, 0
    %p115 = por %p113, %p114
    %p116 = scmp.ne.s32.totalorder %s104, %s105
    %p117 = scmp.eq.s32.totalorder %s18, 1
    %p118 = por %p116, %p117
    %p120 = scmp.ne.s32.totalorder %s105, %s119
    %p121 = scmp.eq.s32.totalorder %s18, 0
    %p122 = por %p120, %p121
    %s124 = sadd.s32 %s123, 1
    %p127 = scmp.eq.s32.totalorder %s12, 1
    %p128 = scmp.ne.s32.totalorder %s123, %s125
    %p129 = scmp.eq.s32.totalorder %s12, 0
    %p130 = por %p128, %p129
    %p131 = scmp.ne.s32.totalorder %s123, %s125
    %p132 = scmp.eq.s32.totalorder %s17, 1
    %p133 = por %p131, %p132
    %p134 = scmp.ne.s32.totalorder %s125, %s126
    %p135 = scmp.eq.s32.totalorder %s17, 0
    %p136 = por %p134, %p135
    %p137 = scmp.ne.s32.totalorder %s125, %s126
    %p138 = scmp.eq.s32.totalorder %s18, 1
    %p139 = por %p137, %p138
    %p141 = scmp.ne.s32.totalorder %s126, %s140
    %p142 = scmp.eq.s32.totalorder %s18, 0
    %p143 = por %p141, %p142
    %s145 = sadd.s32 %s144, 1
    %p148 = scmp.eq.s32.totalorder %s12, 1
    %p149 = scmp.ne.s32.totalorder %s144, %s146
    %p150 = scmp.eq.s32.totalorder %s12, 0
    %p151 = por %p149, %p150
    %p152 = scmp.ne.s32.totalorder %s144, %s146
    %p153 = scmp.eq.s32.totalorder %s17, 1
    %p154 = por %p152, %p153
    %p155 = scmp.ne.s32.totalorder %s146, %s147
    %p156 = scmp.eq.s32.totalorder %s17, 0
    %p157 = por %p155, %p156
    %p158 = scmp.ne.s32.totalorder %s146, %s147
    %p159 = scmp.eq.s32.totalorder %s18, 1
    %p160 = por %p158, %p159
    %p162 = scmp.ne.s32.totalorder %s147, %s161
    %p163 = scmp.eq.s32.totalorder %s18, 0
    %p164 = por %p162, %p163
    %s165 = ssub.s32 %s19, %s31
    %p166 = scmp.eq.s32.totalorder %s165, 0
    %s168 = sadd.s32 %s167, 1
    %s169 = scalar_select %p166, %s167, %s168
    %p172 = pneg %p166
    %p173 = scmp.eq.s32.totalorder %s12, 1
    %p174 = por %p172, %p173
    %p175 = scmp.ne.s32.totalorder %s167, %s170
    %p176 = scmp.eq.s32.totalorder %s12, 0
    %p177 = por %p175, %p176
    %p178 = scmp.ne.s32.totalorder %s167, %s170
    %p179 = scmp.eq.s32.totalorder %s17, 1
    %p180 = por %p178, %p179
    %p181 = scmp.ne.s32.totalorder %s170, %s171
    %p182 = scmp.eq.s32.totalorder %s17, 0
    %p183 = por %p181, %p182
    %p184 = scmp.ne.s32.totalorder %s170, %s171
    %p185 = scmp.eq.s32.totalorder %s18, 1
    %p186 = por %p184, %p185
    %p188 = scmp.ne.s32.totalorder %s171, %s187
    %p189 = scmp.eq.s32.totalorder %s18, 0
    %p190 = por %p188, %p189
    %p191 = scmp.le.s32.totalorder 1, %s12
    %p192 = scmp.lt.s32.totalorder %s12, 3
    %p193 = pnand %p191, %p192
    %p194 = pneg %p193
    // Predicated region
    $region9: #{sim_yolov8_forward.1} parent=5 // pred_check
      _
    $region10: #{sim_yolov8_forward.1} parent=5 // pred_check_branch
      %196 = sbr.rel (%p193) target = $region12
    $region11: #{sim_yolov8_forward.1} parent=5 // pred_region
      %s197 = ssub.s32 %s12, 1
      // Predicated region
      $region13: #{sim_yolov8_forward.1} parent=11 // pred_check
        %p198 = pneg %p73
      $region14: #{sim_yolov8_forward.1} parent=11 // pred_check_branch
        %200 = sbr.rel (%p198) target = $region16
      $region15: #{sim_yolov8_forward.1} parent=11 // pred_region
        _
      $region16: #{sim_yolov8_forward.1} parent=11 // pred_fallthru
        _
      // Predicated region
      $region17: #{sim_yolov8_forward.1} parent=11 // pred_check
        %p201 = pneg %p94
      $region18: #{sim_yolov8_forward.1} parent=11 // pred_check_branch
        %203 = sbr.rel (%p201) target = $region20
      $region19: #{sim_yolov8_forward.1} parent=11 // pred_region
        _
      $region20: #{sim_yolov8_forward.1} parent=11 // pred_fallthru
        _
      // Predicated region
      $region21: #{sim_yolov8_forward.1} parent=11 // pred_check
        %p204 = pneg %p115
      $region22: #{sim_yolov8_forward.1} parent=11 // pred_check_branch
        %206 = sbr.rel (%p204) target = $region24
      $region23: #{sim_yolov8_forward.1} parent=11 // pred_region
        _
      $region24: #{sim_yolov8_forward.1} parent=11 // pred_fallthru
        _
      // Predicated region
      $region25: #{sim_yolov8_forward.1} parent=11 // pred_check
        %p207 = pneg %p136
      $region26: #{sim_yolov8_forward.1} parent=11 // pred_check_branch
        %209 = sbr.rel (%p207) target = $region28
      $region27: #{sim_yolov8_forward.1} parent=11 // pred_region
        _
      $region28: #{sim_yolov8_forward.1} parent=11 // pred_fallthru
        _
      // Predicated region
      $region29: #{sim_yolov8_forward.1} parent=11 // pred_check
        %p210 = pneg %p157
      $region30: #{sim_yolov8_forward.1} parent=11 // pred_check_branch
        %212 = sbr.rel (%p210) target = $region32
      $region31: #{sim_yolov8_forward.1} parent=11 // pred_region
        _
      $region32: #{sim_yolov8_forward.1} parent=11 // pred_fallthru
        _
    $region12: #{sim_yolov8_forward.1} parent=5 // pred_fallthru
      _
    %p213 = scmp.lt.s32.totalorder %s12, 2
    // Predicated region
    $region33: #{sim_yolov8_forward.1} parent=5 // pred_check
      %p214 = pneg %p213
    $region34: #{sim_yolov8_forward.1} parent=5 // pred_check_branch
      %216 = sbr.rel (%p214) target = $region36
    $region35: #{sim_yolov8_forward.1} parent=5 // pred_region
      // Predicated region
      $region37: #{sim_yolov8_forward.1} parent=35 // pred_check
        %p217 = pneg %p46
      $region38: #{sim_yolov8_forward.1} parent=35 // pred_check_branch
        %219 = sbr.rel (%p217) target = $region40
      $region39: #{sim_yolov8_forward.1} parent=35 // pred_region
        %s220 = smul.u32 2, %s20
        %p221 = scmp.lt.s32.totalorder %s19, 1
        %s222 = scalar_select %p221, %s19, 1
        %p223 = scmp.lt.s32.totalorder %s220, 1
        %s224 = scalar_select %p223, %s220, 1
        %s225 = smul.addr %s224, 4
        %s226 = smul.addr %s222, 16
        %s227 = sadd.s32 %s225, %s226
        %s228 = smul.addr %s227, 8
        %s229 = scalar_lea.vmem %s0, %s228
        %s230 = smul.u32 2, %s20
      $region40: #{sim_yolov8_forward.1} parent=35 // pred_fallthru
        _
    $region36: #{sim_yolov8_forward.1} parent=5 // pred_fallthru
      _
    %p231 = scmp.le.s32.totalorder 1, %s12
    %p232 = scmp.lt.s32.totalorder %s12, 3
    %p233 = pnand %p231, %p232
    %p234 = pneg %p233
    // Predicated region
    $region41: #{sim_yolov8_forward.1} parent=5 // pred_check
      _
    $region42: #{sim_yolov8_forward.1} parent=5 // pred_check_branch
      %236 = sbr.rel (%p233) target = $region44
    $region43: #{sim_yolov8_forward.1} parent=5 // pred_region
      %s237 = ssub.s32 %s12, 1
      %s238 = smul.u32 2, %s22
      %p239 = scmp.lt.s32.totalorder %s21, 1
      %s240 = scalar_select %p239, %s21, 1
      %p241 = scmp.lt.s32.totalorder %s238, 1
      %s242 = scalar_select %p241, %s238, 1
      %s243 = smul.addr %s242, 4
      %s244 = smul.addr %s240, 16
      %s245 = sadd.s32 %s243, %s244
      %s246 = smul.addr %s245, 8
      %s247 = scalar_lea.vmem %s0, %s246
      %p248 = pneg %p52
      %p249 = pneg %p49
      %p250 = pneg %p73
      %p251 = pneg %p70
      %p252 = pneg %p94
      %p253 = pneg %p91
      %p254 = pneg %p115
      %p255 = pneg %p112
      %p256 = pneg %p136
      %p257 = pneg %p133
      %p258 = pneg %p157
      %p259 = pneg %p154
      %p260 = pneg %p183
      %p261 = pneg %p180
      %p262 = scmp.lt.s32.totalorder %s21, 1
      %s263 = scalar_select %p262, %s21, 1
      %s264 = smul.addr %s263, 2
      %s265 = smul.addr %s264, 2
      %s266 = scalar_lea.vmem %s6, %s265
      %s267 = smul.u32 2, %s22
      %p268 = scmp.lt.s32.totalorder %s21, 1
      %s269 = scalar_select %p268, %s21, 1
      %p270 = scmp.lt.s32.totalorder %s267, 1
      %s271 = scalar_select %p270, %s267, 1
      %s272 = smul.addr %s271, 4
      %s273 = smul.addr %s269, 16
      %s274 = sadd.s32 %s272, %s273
      %s275 = smul.addr %s274, 8
      %s276 = scalar_lea.vmem %s0, %s275
      %s277 = smul.u32 2, %s22
      %p278 = scmp.lt.s32.totalorder %s21, 1
      %s279 = scalar_select %p278, %s21, 1
      %s280 = smul.addr %s279, 2
      %s281 = smul.addr %s280, 2
      %s282 = scalar_lea.vmem %s6, %s281
      %p283 = scmp.eq.s32.totalorder %s22, 0
      // Predicated region
      $region45: #{sim_yolov8_forward.1} parent=43 // pred_check
        %p284 = pneg %p283
      $region46: #{sim_yolov8_forward.1} parent=43 // pred_check_branch
        %286 = sbr.rel (%p284) target = $region48
      $region47: #{sim_yolov8_forward.1} parent=43 // pred_region
        %287 = vst [vmem:[#allocation2] sm:$0xff] 0.0
      $region48: #{sim_yolov8_forward.1} parent=43 // pred_fallthru
        _
      %v288 = vld [vmem:[%s276] sm:$0xff]
      %v289 = vld [vmem:[%s276 + $0x8] sm:$0xff]
      %v290 = vld [vmem:[%s276 + $0x10] sm:$0xff]
      %v291 = vld [vmem:[%s276 + $0x18] sm:$0xff]
      %v292 = vld [vmem:[%s276 + $0x20] sm:$0xff]
      %v293 = vld [vmem:[%s276 + $0x28] sm:$0xff]
      %v294 = vld [vmem:[%s276 + $0x30] sm:$0xff]
      %v295 = vld [vmem:[%s276 + $0x38] sm:$0xff]
      %v296 = vld [vmem:[%s276 + $0x40] sm:$0xff]
      %v297 = vld [vmem:[%s276 + $0x48] sm:$0xff]
      %v298 = vld [vmem:[%s276 + $0x50] sm:$0xff]
      %v299 = vld [vmem:[%s276 + $0x58] sm:$0xff]
      %v300 = vld [vmem:[%s276 + $0x60] sm:$0xff]
      %v301 = vld [vmem:[%s276 + $0x68] sm:$0xff]
      %v302 = vld [vmem:[%s276 + $0x70] sm:$0xff]
      %v303 = vld [vmem:[%s276 + $0x78] sm:$0xff]
      %v304 = vld [vmem:[#allocation2] sm:$0xff]
      %v305 = vadd.f32 %v288, %v292
      %v306 = vrot.slane %v305, 4
      %v307 = vadd.f32 %v305, %v306
      %v308 = vrot.slane %v307, 2
      %v309 = vadd.f32 %v307, %v308
      %v310 = vrot.slane %v309, 1
      %v311 = vadd.f32 %v309, %v310
      %v312 = vadd.f32 %v289, %v293
      %v313 = vrot.slane %v312, 4
      %v314 = vadd.f32 %v312, %v313
      %v315 = vrot.slane %v314, 2
      %v316 = vadd.f32 %v314, %v315
      %v317 = vrot.slane %v316, 1
      %v318 = vadd.f32 %v316, %v317
      %v319 = vadd.f32 %v290, %v294
      %v320 = vrot.slane %v319, 4
      %v321 = vadd.f32 %v319, %v320
      %v322 = vrot.slane %v321, 2
      %v323 = vadd.f32 %v321, %v322
      %v324 = vrot.slane %v323, 1
      %v325 = vadd.f32 %v323, %v324
      %v326 = vadd.f32 %v291, %v295
      %v327 = vrot.slane %v326, 4
      %v328 = vadd.f32 %v326, %v327
      %v329 = vrot.slane %v328, 2
      %v330 = vadd.f32 %v328, %v329
      %v331 = vrot.slane %v330, 1
      %v332 = vadd.f32 %v330, %v331
      %v333 = vadd.f32 %v296, %v300
      %v334 = vrot.slane %v333, 4
      %v335 = vadd.f32 %v333, %v334
      %v336 = vrot.slane %v335, 2
      %v337 = vadd.f32 %v335, %v336
      %v338 = vrot.slane %v337, 1
      %v339 = vadd.f32 %v337, %v338
      %v340 = vadd.f32 %v297, %v301
      %v341 = vrot.slane %v340, 4
      %v342 = vadd.f32 %v340, %v341
      %v343 = vrot.slane %v342, 2
      %v344 = vadd.f32 %v342, %v343
      %v345 = vrot.slane %v344, 1
      %v346 = vadd.f32 %v344, %v345
      %v347 = vadd.f32 %v298, %v302
      %v348 = vrot.slane %v347, 4
      %v349 = vadd.f32 %v347, %v348
      %v350 = vrot.slane %v349, 2
      %v351 = vadd.f32 %v349, %v350
      %v352 = vrot.slane %v351, 1
      %v353 = vadd.f32 %v351, %v352
      %v354 = vadd.f32 %v299, %v303
      %v355 = vrot.slane %v354, 4
      %v356 = vadd.f32 %v354, %v355
      %v357 = vrot.slane %v356, 2
      %v358 = vadd.f32 %v356, %v357
      %v359 = vrot.slane %v358, 1
      %v360 = vadd.f32 %v358, %v359
      %v369 = vcombine.low %v311, %v318
      %v370 = vcombine.low %v325, %v332
      %v372 = vunpack.c.l.s4 1983009808
      %v373 = vunpack.c.0.s8 %v372
      %v374 = vlaneseq
      %v375 = vshrl.u32 %v374, 7
      %v376 = vsub.s32 %v373, %v375
      %v377 = vrot.slane %v369, %v376
      %v379 = vunpack.c.l.s4 1983009808
      %v380 = vunpack.c.0.s8 %v379
      %v381 = vlaneseq
      %v382 = vshrl.u32 %v381, 7
      %v383 = vsub.s32 %v380, %v382
      %v384 = vrot.slane %v370, %v383
      %v385 = vcombine.low %v377, %v384
      %v386 = vcombine.low %v339, %v346
      %v387 = vcombine.low %v353, %v360
      %v389 = vunpack.c.l.s4 1983009808
      %v390 = vunpack.c.0.s8 %v389
      %v391 = vlaneseq
      %v392 = vshrl.u32 %v391, 7
      %v393 = vsub.s32 %v390, %v392
      %v394 = vrot.slane %v386, %v393
      %v396 = vunpack.c.l.s4 1983009808
      %v397 = vunpack.c.0.s8 %v396
      %v398 = vlaneseq
      %v399 = vshrl.u32 %v398, 7
      %v400 = vsub.s32 %v397, %v399
      %v401 = vrot.slane %v387, %v400
      %v402 = vcombine.low %v394, %v401
      %vm403 = vcmask 1044484
      %v404 = vsel %vm403, %v385, %v385
      %vm405 = vcmask 1046534
      %v406 = vsel %vm405, %v385, %v404
      %v407 = vrot.slane %v402, 7
      %vm408 = vcmask 1041409
      %v409 = vsel %vm408, %v407, %v406
      %vm410 = vcmask 1043459
      %v411 = vsel %vm410, %v407, %v409
      %vm412 = vcmask 1045509
      %v413 = vsel %vm412, %v407, %v411
      %vm414 = vcmask 1047559
      %v415 = vsel %vm414, %v407, %v413
      %v417 = vadd.f32 %v304, %v415
      %418 = vst [vmem:[#allocation2] sm:$0xff] %v417
      // Predicated region
      $region49: #{sim_yolov8_forward.1} parent=43 // pred_check
        %p419 = pneg %p283
      $region50: #{sim_yolov8_forward.1} parent=43 // pred_check_branch
        %421 = sbr.rel (%p419) target = $region52
      $region51: #{sim_yolov8_forward.1} parent=43 // pred_region
        %v422 = vld [vmem:[#allocation2] sm:$0xff]
        %v423 = vmul.f32 %v422, 0.0625
        %v424 = vld [vmem:[%s1] sm:$0xff]
        %v425 = vld [vmem:[%s1 + $0x8] sm:$0xff]
        %v426 = vld [vmem:[%s1 + $0x10] sm:$0xff]
        %v427 = vld [vmem:[%s1 + $0x18] sm:$0xff]
        %v428 = vld [vmem:[%s1 + $0x20] sm:$0xff]
        %v429 = vld [vmem:[%s1 + $0x28] sm:$0xff]
        %v430 = vld [vmem:[%s1 + $0x30] sm:$0xff]
        %v431 = vld [vmem:[%s1 + $0x38] sm:$0xff]
        %v432 = vld [vmem:[%s1 + $0x40] sm:$0xff]
        %v433 = vld [vmem:[%s1 + $0x48] sm:$0xff]
        %v434 = vld [vmem:[%s1 + $0x50] sm:$0xff]
        %v435 = vld [vmem:[%s1 + $0x58] sm:$0xff]
        %v436 = vld [vmem:[%s1 + $0x60] sm:$0xff]
        %v437 = vld [vmem:[%s1 + $0x68] sm:$0xff]
        %v438 = vld [vmem:[%s1 + $0x70] sm:$0xff]
        %v439 = vld [vmem:[%s1 + $0x78] sm:$0xff]
        %v440 = vld [vmem:[%s1 + $0x80] sm:$0xff]
        %v441 = vld [vmem:[%s1 + $0x88] sm:$0xff]
        %v442 = vld [vmem:[%s1 + $0x90] sm:$0xff]
        %v443 = vld [vmem:[%s1 + $0x98] sm:$0xff]
        %v444 = vld [vmem:[%s1 + $0xa0] sm:$0xff]
        %v445 = vld [vmem:[%s1 + $0xa8] sm:$0xff]
        %v446 = vld [vmem:[%s1 + $0xb0] sm:$0xff]
        %v447 = vld [vmem:[%s1 + $0xb8] sm:$0xff]
        %v448 = vld [vmem:[%s1 + $0xc0] sm:$0xff]
        %v449 = vld [vmem:[%s1 + $0xc8] sm:$0xff]
        %v450 = vld [vmem:[%s1 + $0xd0] sm:$0xff]
        %v451 = vld [vmem:[%s1 + $0xd8] sm:$0xff]
        %v452 = vld [vmem:[%s1 + $0xe0] sm:$0xff]
        %v453 = vld [vmem:[%s1 + $0xe8] sm:$0xff]
        %v454 = vld [vmem:[%s1 + $0xf0] sm:$0xff]
        %v455 = vld [vmem:[%s1 + $0xf8] sm:$0xff]
        %v456 = vld [vmem:[%s1 + $0x100] sm:$0xff]
        %v457 = vld [vmem:[%s1 + $0x108] sm:$0xff]
        %v458 = vld [vmem:[%s1 + $0x110] sm:$0xff]
        %v459 = vld [vmem:[%s1 + $0x118] sm:$0xff]
        %v460 = vld [vmem:[%s1 + $0x120] sm:$0xff]
        %v461 = vld [vmem:[%s1 + $0x128] sm:$0xff]
        %v462 = vld [vmem:[%s1 + $0x130] sm:$0xff]
        %v463 = vld [vmem:[%s1 + $0x138] sm:$0xff]
        %v464 = vld [vmem:[%s1 + $0x140] sm:$0xff]
        %v465 = vld [vmem:[%s1 + $0x148] sm:$0xff]
        %v466 = vld [vmem:[%s1 + $0x150] sm:$0xff]
        %v467 = vld [vmem:[%s1 + $0x158] sm:$0xff]
        %v468 = vld [vmem:[%s1 + $0x160] sm:$0xff]
        %v469 = vld [vmem:[%s1 + $0x168] sm:$0xff]
        %v470 = vld [vmem:[%s1 + $0x170] sm:$0xff]
        %v471 = vld [vmem:[%s1 + $0x178] sm:$0xff]
        %v472 = vld [vmem:[%s1 + $0x180] sm:$0xff]
        %v473 = vld [vmem:[%s1 + $0x188] sm:$0xff]
        %v474 = vld [vmem:[%s1 + $0x190] sm:$0xff]
        %v475 = vld [vmem:[%s1 + $0x198] sm:$0xff]
        %v476 = vld [vmem:[%s1 + $0x1a0] sm:$0xff]
        %v477 = vld [vmem:[%s1 + $0x1a8] sm:$0xff]
        %v478 = vld [vmem:[%s1 + $0x1b0] sm:$0xff]
        %v479 = vld [vmem:[%s1 + $0x1b8] sm:$0xff]
        %v480 = vld [vmem:[%s1 + $0x1c0] sm:$0xff]
        %v481 = vld [vmem:[%s1 + $0x1c8] sm:$0xff]
        %v482 = vld [vmem:[%s1 + $0x1d0] sm:$0xff]
        %v483 = vld [vmem:[%s1 + $0x1d8] sm:$0xff]
        %v484 = vld [vmem:[%s1 + $0x1e0] sm:$0xff]
        %v485 = vld [vmem:[%s1 + $0x1e8] sm:$0xff]
        %v486 = vld [vmem:[%s1 + $0x1f0] sm:$0xff]
        %v487 = vld [vmem:[%s1 + $0x1f8] sm:$0xff]
        %v488 = vld [vmem:[%s1 + $0x200] sm:$0xff]
        %v489 = vld [vmem:[%s1 + $0x208] sm:$0xff]
        %v490 = vld [vmem:[%s1 + $0x210] sm:$0xff]
        %v491 = vld [vmem:[%s1 + $0x218] sm:$0xff]
        %v492 = vld [vmem:[%s1 + $0x220] sm:$0xff]
        %v493 = vld [vmem:[%s1 + $0x228] sm:$0xff]
        %v494 = vld [vmem:[%s1 + $0x230] sm:$0xff]
        %v495 = vld [vmem:[%s1 + $0x238] sm:$0xff]
        %v496 = vld [vmem:[%s1 + $0x240] sm:$0xff]
        %v497 = vld [vmem:[%s1 + $0x248] sm:$0xff]
        %v498 = vld [vmem:[%s1 + $0x250] sm:$0xff]
        %v499 = vld [vmem:[%s1 + $0x258] sm:$0xff]
        %v500 = vld [vmem:[%s1 + $0x260] sm:$0xff]
        %v501 = vld [vmem:[%s1 + $0x268] sm:$0xff]
        %v502 = vld [vmem:[%s1 + $0x270] sm:$0xff]
        %v503 = vld [vmem:[%s1 + $0x278] sm:$0xff]
        %v504 = vld [vmem:[%s1 + $0x280] sm:$0xff]
        %v505 = vld [vmem:[%s1 + $0x288] sm:$0xff]
        %v506 = vld [vmem:[%s1 + $0x290] sm:$0xff]
        %v507 = vld [vmem:[%s1 + $0x298] sm:$0xff]
        %v508 = vld [vmem:[%s1 + $0x2a0] sm:$0xff]
        %v509 = vld [vmem:[%s1 + $0x2a8] sm:$0xff]
        %v510 = vld [vmem:[%s1 + $0x2b0] sm:$0xff]
        %v511 = vld [vmem:[%s1 + $0x2b8] sm:$0xff]
        %v512 = vld [vmem:[%s1 + $0x2c0] sm:$0xff]
        %v513 = vld [vmem:[%s1 + $0x2c8] sm:$0xff]
        %v514 = vld [vmem:[%s1 + $0x2d0] sm:$0xff]
        %v515 = vld [vmem:[%s1 + $0x2d8] sm:$0xff]
        %v516 = vld [vmem:[%s1 + $0x2e0] sm:$0xff]
        %v517 = vld [vmem:[%s1 + $0x2e8] sm:$0xff]
        %v518 = vld [vmem:[%s1 + $0x2f0] sm:$0xff]
        %v519 = vld [vmem:[%s1 + $0x2f8] sm:$0xff]
        %v520 = vld [vmem:[%s1 + $0x300] sm:$0xff]
        %v521 = vld [vmem:[%s1 + $0x308] sm:$0xff]
        %v522 = vld [vmem:[%s1 + $0x310] sm:$0xff]
        %v523 = vld [vmem:[%s1 + $0x318] sm:$0xff]
        %v524 = vld [vmem:[%s1 + $0x320] sm:$0xff]
        %v525 = vld [vmem:[%s1 + $0x328] sm:$0xff]
        %v526 = vld [vmem:[%s1 + $0x330] sm:$0xff]
        %v527 = vld [vmem:[%s1 + $0x338] sm:$0xff]
        %v528 = vld [vmem:[%s1 + $0x340] sm:$0xff]
        %v529 = vld [vmem:[%s1 + $0x348] sm:$0xff]
        %v530 = vld [vmem:[%s1 + $0x350] sm:$0xff]
        %v531 = vld [vmem:[%s1 + $0x358] sm:$0xff]
        %v532 = vld [vmem:[%s1 + $0x360] sm:$0xff]
        %v533 = vld [vmem:[%s1 + $0x368] sm:$0xff]
        %v534 = vld [vmem:[%s1 + $0x370] sm:$0xff]
        %v535 = vld [vmem:[%s1 + $0x378] sm:$0xff]
        %v536 = vld [vmem:[%s1 + $0x380] sm:$0xff]
        %v537 = vld [vmem:[%s1 + $0x388] sm:$0xff]
        %v538 = vld [vmem:[%s1 + $0x390] sm:$0xff]
        %v539 = vld [vmem:[%s1 + $0x398] sm:$0xff]
        %v540 = vld [vmem:[%s1 + $0x3a0] sm:$0xff]
        %v541 = vld [vmem:[%s1 + $0x3a8] sm:$0xff]
        %v542 = vld [vmem:[%s1 + $0x3b0] sm:$0xff]
        %v543 = vld [vmem:[%s1 + $0x3b8] sm:$0xff]
        %v544 = vld [vmem:[%s1 + $0x3c0] sm:$0xff]
        %v545 = vld [vmem:[%s1 + $0x3c8] sm:$0xff]
        %v546 = vld [vmem:[%s1 + $0x3d0] sm:$0xff]
        %v547 = vld [vmem:[%s1 + $0x3d8] sm:$0xff]
        %v548 = vld [vmem:[%s1 + $0x3e0] sm:$0xff]
        %v549 = vld [vmem:[%s1 + $0x3e8] sm:$0xff]
        %v550 = vld [vmem:[%s1 + $0x3f0] sm:$0xff]
        %v551 = vld [vmem:[%s1 + $0x3f8] sm:$0xff]
        %v552 = vld [vmem:[%s1 + $0x400] sm:$0xff]
        %v553 = vld [vmem:[%s1 + $0x408] sm:$0xff]
        %v554 = vld [vmem:[%s1 + $0x410] sm:$0xff]
        %v555 = vld [vmem:[%s1 + $0x418] sm:$0xff]
        %v556 = vld [vmem:[%s1 + $0x420] sm:$0xff]
        %v557 = vld [vmem:[%s1 + $0x428] sm:$0xff]
        %v558 = vld [vmem:[%s1 + $0x430] sm:$0xff]
        %v559 = vld [vmem:[%s1 + $0x438] sm:$0xff]
        %v560 = vld [vmem:[%s1 + $0x440] sm:$0xff]
        %v561 = vld [vmem:[%s1 + $0x448] sm:$0xff]
        %v562 = vld [vmem:[%s1 + $0x450] sm:$0xff]
        %v563 = vld [vmem:[%s1 + $0x458] sm:$0xff]
        %v564 = vld [vmem:[%s1 + $0x460] sm:$0xff]
        %v565 = vld [vmem:[%s1 + $0x468] sm:$0xff]
        %v566 = vld [vmem:[%s1 + $0x470] sm:$0xff]
        %v567 = vld [vmem:[%s1 + $0x478] sm:$0xff]
        %v568 = vld [vmem:[%s1 + $0x480] sm:$0xff]
        %v569 = vld [vmem:[%s1 + $0x488] sm:$0xff]
        %v570 = vld [vmem:[%s1 + $0x490] sm:$0xff]
        %v571 = vld [vmem:[%s1 + $0x498] sm:$0xff]
        %v572 = vld [vmem:[%s1 + $0x4a0] sm:$0xff]
        %v573 = vld [vmem:[%s1 + $0x4a8] sm:$0xff]
        %v574 = vld [vmem:[%s1 + $0x4b0] sm:$0xff]
        %v575 = vld [vmem:[%s1 + $0x4b8] sm:$0xff]
        %v576 = vld [vmem:[%s1 + $0x4c0] sm:$0xff]
        %v577 = vld [vmem:[%s1 + $0x4c8] sm:$0xff]
        %v578 = vld [vmem:[%s1 + $0x4d0] sm:$0xff]
        %v579 = vld [vmem:[%s1 + $0x4d8] sm:$0xff]
        %v580 = vld [vmem:[%s1 + $0x4e0] sm:$0xff]
        %v581 = vld [vmem:[%s1 + $0x4e8] sm:$0xff]
        %v582 = vld [vmem:[%s1 + $0x4f0] sm:$0xff]
        %v583 = vld [vmem:[%s1 + $0x4f8] sm:$0xff]
        %v584 = vld [vmem:[%s1 + $0x500] sm:$0xff]
        %v585 = vld [vmem:[%s1 + $0x508] sm:$0xff]
        %v586 = vld [vmem:[%s1 + $0x510] sm:$0xff]
        %v587 = vld [vmem:[%s1 + $0x518] sm:$0xff]
        %v588 = vld [vmem:[%s1 + $0x520] sm:$0xff]
        %v589 = vld [vmem:[%s1 + $0x528] sm:$0xff]
        %v590 = vld [vmem:[%s1 + $0x530] sm:$0xff]
        %v591 = vld [vmem:[%s1 + $0x538] sm:$0xff]
        %v592 = vld [vmem:[%s1 + $0x540] sm:$0xff]
        %v593 = vld [vmem:[%s1 + $0x548] sm:$0xff]
        %v594 = vld [vmem:[%s1 + $0x550] sm:$0xff]
        %v595 = vld [vmem:[%s1 + $0x558] sm:$0xff]
        %v596 = vld [vmem:[%s1 + $0x560] sm:$0xff]
        %v597 = vld [vmem:[%s1 + $0x568] sm:$0xff]
        %v598 = vld [vmem:[%s1 + $0x570] sm:$0xff]
        %v599 = vld [vmem:[%s1 + $0x578] sm:$0xff]
        %v600 = vld [vmem:[%s1 + $0x580] sm:$0xff]
        %v601 = vld [vmem:[%s1 + $0x588] sm:$0xff]
        %v602 = vld [vmem:[%s1 + $0x590] sm:$0xff]
        %v603 = vld [vmem:[%s1 + $0x598] sm:$0xff]
        %v604 = vld [vmem:[%s1 + $0x5a0] sm:$0xff]
        %v605 = vld [vmem:[%s1 + $0x5a8] sm:$0xff]
        %v606 = vld [vmem:[%s1 + $0x5b0] sm:$0xff]
        %v607 = vld [vmem:[%s1 + $0x5b8] sm:$0xff]
        %v608 = vld [vmem:[%s1 + $0x5c0] sm:$0xff]
        %v609 = vld [vmem:[%s1 + $0x5c8] sm:$0xff]
        %v610 = vld [vmem:[%s1 + $0x5d0] sm:$0xff]
        %v611 = vld [vmem:[%s1 + $0x5d8] sm:$0xff]
        %v612 = vld [vmem:[%s1 + $0x5e0] sm:$0xff]
        %v613 = vld [vmem:[%s1 + $0x5e8] sm:$0xff]
        %v614 = vld [vmem:[%s1 + $0x5f0] sm:$0xff]
        %v615 = vld [vmem:[%s1 + $0x5f8] sm:$0xff]
        %v616 = vld [vmem:[%s1 + $0x600] sm:$0xff]
        %v617 = vld [vmem:[%s1 + $0x608] sm:$0xff]
        %v618 = vld [vmem:[%s1 + $0x610] sm:$0xff]
        %v619 = vld [vmem:[%s1 + $0x618] sm:$0xff]
        %v620 = vld [vmem:[%s1 + $0x620] sm:$0xff]
        %v621 = vld [vmem:[%s1 + $0x628] sm:$0xff]
        %v622 = vld [vmem:[%s1 + $0x630] sm:$0xff]
        %v623 = vld [vmem:[%s1 + $0x638] sm:$0xff]
        %v624 = vld [vmem:[%s1 + $0x640] sm:$0xff]
        %v625 = vld [vmem:[%s1 + $0x648] sm:$0xff]
        %v626 = vld [vmem:[%s1 + $0x650] sm:$0xff]
        %v627 = vld [vmem:[%s1 + $0x658] sm:$0xff]
        %v628 = vld [vmem:[%s1 + $0x660] sm:$0xff]
        %v629 = vld [vmem:[%s1 + $0x668] sm:$0xff]
        %v630 = vld [vmem:[%s1 + $0x670] sm:$0xff]
        %v631 = vld [vmem:[%s1 + $0x678] sm:$0xff]
        %v632 = vld [vmem:[%s1 + $0x680] sm:$0xff]
        %v633 = vld [vmem:[%s1 + $0x688] sm:$0xff]
        %v634 = vld [vmem:[%s1 + $0x690] sm:$0xff]
        %v635 = vld [vmem:[%s1 + $0x698] sm:$0xff]
        %v636 = vld [vmem:[%s1 + $0x6a0] sm:$0xff]
        %v637 = vld [vmem:[%s1 + $0x6a8] sm:$0xff]
        %v638 = vld [vmem:[%s1 + $0x6b0] sm:$0xff]
        %v639 = vld [vmem:[%s1 + $0x6b8] sm:$0xff]
        %v640 = vld [vmem:[%s1 + $0x6c0] sm:$0xff]
        %v641 = vld [vmem:[%s1 + $0x6c8] sm:$0xff]
        %v642 = vld [vmem:[%s1 + $0x6d0] sm:$0xff]
        %v643 = vld [vmem:[%s1 + $0x6d8] sm:$0xff]
        %v644 = vld [vmem:[%s1 + $0x6e0] sm:$0xff]
        %v645 = vld [vmem:[%s1 + $0x6e8] sm:$0xff]
        %v646 = vld [vmem:[%s1 + $0x6f0] sm:$0xff]
        %v647 = vld [vmem:[%s1 + $0x6f8] sm:$0xff]
        %v648 = vld [vmem:[%s1 + $0x700] sm:$0xff]
        %v649 = vld [vmem:[%s1 + $0x708] sm:$0xff]
        %v650 = vld [vmem:[%s1 + $0x710] sm:$0xff]
        %v651 = vld [vmem:[%s1 + $0x718] sm:$0xff]
        %v652 = vld [vmem:[%s1 + $0x720] sm:$0xff]
        %v653 = vld [vmem:[%s1 + $0x728] sm:$0xff]
        %v654 = vld [vmem:[%s1 + $0x730] sm:$0xff]
        %v655 = vld [vmem:[%s1 + $0x738] sm:$0xff]
        %v656 = vld [vmem:[%s1 + $0x740] sm:$0xff]
        %v657 = vld [vmem:[%s1 + $0x748] sm:$0xff]
        %v658 = vld [vmem:[%s1 + $0x750] sm:$0xff]
        %v659 = vld [vmem:[%s1 + $0x758] sm:$0xff]
        %v660 = vld [vmem:[%s1 + $0x760] sm:$0xff]
        %v661 = vld [vmem:[%s1 + $0x768] sm:$0xff]
        %v662 = vld [vmem:[%s1 + $0x770] sm:$0xff]
        %v663 = vld [vmem:[%s1 + $0x778] sm:$0xff]
        %v664 = vld [vmem:[%s1 + $0x780] sm:$0xff]
        %v665 = vld [vmem:[%s1 + $0x788] sm:$0xff]
        %v666 = vld [vmem:[%s1 + $0x790] sm:$0xff]
        %v667 = vld [vmem:[%s1 + $0x798] sm:$0xff]
        %v668 = vld [vmem:[%s1 + $0x7a0] sm:$0xff]
        %v669 = vld [vmem:[%s1 + $0x7a8] sm:$0xff]
        %v670 = vld [vmem:[%s1 + $0x7b0] sm:$0xff]
        %v671 = vld [vmem:[%s1 + $0x7b8] sm:$0xff]
        %v672 = vld [vmem:[%s1 + $0x7c0] sm:$0xff]
        %v673 = vld [vmem:[%s1 + $0x7c8] sm:$0xff]
        %v674 = vld [vmem:[%s1 + $0x7d0] sm:$0xff]
        %v675 = vld [vmem:[%s1 + $0x7d8] sm:$0xff]
        %v676 = vld [vmem:[%s1 + $0x7e0] sm:$0xff]
        %v677 = vld [vmem:[%s1 + $0x7e8] sm:$0xff]
        %v678 = vld [vmem:[%s1 + $0x7f0] sm:$0xff]
        %v679 = vld [vmem:[%s1 + $0x7f8] sm:$0xff]
        %v681 = vcombine.high %v423, %v423
        %v683 = vunpack.c.l.s4 1983009808
        %v684 = vunpack.c.0.s8 %v683
        %v685 = vlaneseq
        %v686 = vshrl.u32 %v685, 7
        %v687 = vsub.s32 %v684, %v686
        %v688 = vrot.slane %v423, %v687
        %v690 = vunpack.c.l.s4 1983009808
        %v691 = vunpack.c.0.s8 %v690
        %v692 = vlaneseq
        %v693 = vshrl.u32 %v692, 7
        %v694 = vsub.s32 %v691, %v693
        %v695 = vrot.slane %v681, %v694
        %v696 = vcombine.high %v688, %v688
        %v697 = vcombine.high %v695, %v695
        %702 = vmatprep.subr.mxu0 %v485
        %703 = vmatpush1.msra.mxu0 %v484
        %704 = vmatprep.subr.mxu0 %v481
        %705 = vmatpush1.msra.mxu0 %v480
        %706 = vmatprep.subr.mxu0 %v477
        %707 = vmatpush1.msra.mxu0 %v476
        %708 = vmatprep.subr.mxu0 %v473
        %709 = vmatpush1.msra.mxu0 %v472
        %710 = vmatprep.subr.mxu0 %v469
        %711 = vmatpush1.msra.mxu0 %v468
        %712 = vmatprep.subr.mxu0 %v465
        %713 = vmatpush1.msra.mxu0 %v464
        %714 = vmatprep.subr.mxu0 %v461
        %715 = vmatpush1.msra.mxu0 %v460
        %716 = vmatprep.subr.mxu0 %v457
        %717 = vmatpush1.msra.mxu0 %v456
        %718 = vmatprep.subr.mxu0 %v453
        %719 = vmatpush1.msra.mxu0 %v452
        %720 = vmatprep.subr.mxu0 %v449
        %721 = vmatpush1.msra.mxu0 %v448
        %722 = vmatprep.subr.mxu0 %v445
        %723 = vmatpush1.msra.mxu0 %v444
        %724 = vmatprep.subr.mxu0 %v441
        %725 = vmatpush1.msra.mxu0 %v440
        %726 = vmatprep.subr.mxu0 %v437
        %727 = vmatpush1.msra.mxu0 %v436
        %728 = vmatprep.subr.mxu0 %v433
        %729 = vmatpush1.msra.mxu0 %v432
        %730 = vmatprep.subr.mxu0 %v429
        %731 = vmatpush1.msra.mxu0 %v428
        %732 = vmatprep.subr.mxu0 %v425
        %733 = vmatpush1.msra.mxu0 %v424
        %734 = vmatprep.subr.mxu0 %v549
        %735 = vmatpush2.msra.mxu0 %v548
        %736 = vmatprep.subr.mxu0 %v545
        %737 = vmatpush2.msra.mxu0 %v544
        %738 = vmatprep.subr.mxu0 %v541
        %739 = vmatpush2.msra.mxu0 %v540
        %740 = vmatprep.subr.mxu0 %v537
        %741 = vmatpush2.msra.mxu0 %v536
        %742 = vmatprep.subr.mxu0 %v533
        %743 = vmatpush2.msra.mxu0 %v532
        %744 = vmatprep.subr.mxu0 %v529
        %745 = vmatpush2.msra.mxu0 %v528
        %746 = vmatprep.subr.mxu0 %v525
        %747 = vmatpush2.msra.mxu0 %v524
        %748 = vmatprep.subr.mxu0 %v521
        %749 = vmatpush2.msra.mxu0 %v520
        %750 = vmatprep.subr.mxu0 %v517
        %751 = vmatpush2.msra.mxu0 %v516
        %752 = vmatprep.subr.mxu0 %v513
        %753 = vmatpush2.msra.mxu0 %v512
        %754 = vmatprep.subr.mxu0 %v509
        %755 = vmatpush2.msra.mxu0 %v508
        %756 = vmatprep.subr.mxu0 %v505
        %757 = vmatpush2.msra.mxu0 %v504
        %758 = vmatprep.subr.mxu0 %v501
        %759 = vmatpush2.msra.mxu0 %v500
        %760 = vmatprep.subr.mxu0 %v497
        %761 = vmatpush2.msra.mxu0 %v496
        %762 = vmatprep.subr.mxu0 %v493
        %763 = vmatpush2.msra.mxu0 %v492
        %764 = vmatprep.subr.mxu0 %v489
        %765 = vmatpush2.msra.mxu0 %v488
        %766 = vmatprep.mubr.f32.mxu0 %v696
        %767 = vmatmul.mubr.f32.gmra.mxu0 %v688
        %v768 = vpop.f32.mrf.mxu0
        %v769 = vadd.f32 0.0, %v768
        %v770 = vpop.f32.mrf.mxu0
        %v771 = vadd.f32 0.0, %v770
        %772 = vdwg.mxu0
        %773 = vmatprep.subr.mxu0 %v613
        %774 = vmatpush1.msra.mxu0 %v612
        %775 = vmatprep.subr.mxu0 %v609
        %776 = vmatpush1.msra.mxu0 %v608
        %777 = vmatprep.subr.mxu0 %v605
        %778 = vmatpush1.msra.mxu0 %v604
        %779 = vmatprep.subr.mxu0 %v601
        %780 = vmatpush1.msra.mxu0 %v600
        %781 = vmatprep.subr.mxu0 %v597
        %782 = vmatpush1.msra.mxu0 %v596
        %783 = vmatprep.subr.mxu0 %v593
        %784 = vmatpush1.msra.mxu0 %v592
        %785 = vmatprep.subr.mxu0 %v589
        %786 = vmatpush1.msra.mxu0 %v588
        %787 = vmatprep.subr.mxu0 %v585
        %788 = vmatpush1.msra.mxu0 %v584
        %789 = vmatprep.subr.mxu0 %v581
        %790 = vmatpush1.msra.mxu0 %v580
        %791 = vmatprep.subr.mxu0 %v577
        %792 = vmatpush1.msra.mxu0 %v576
        %793 = vmatprep.subr.mxu0 %v573
        %794 = vmatpush1.msra.mxu0 %v572
        %795 = vmatprep.subr.mxu0 %v569
        %796 = vmatpush1.msra.mxu0 %v568
        %797 = vmatprep.subr.mxu0 %v565
        %798 = vmatpush1.msra.mxu0 %v564
        %799 = vmatprep.subr.mxu0 %v561
        %800 = vmatpush1.msra.mxu0 %v560
        %801 = vmatprep.subr.mxu0 %v557
        %802 = vmatpush1.msra.mxu0 %v556
        %803 = vmatprep.subr.mxu0 %v553
        %804 = vmatpush1.msra.mxu0 %v552
        %805 = vmatprep.subr.mxu0 %v677
        %806 = vmatpush2.msra.mxu0 %v676
        %807 = vmatprep.subr.mxu0 %v673
        %808 = vmatpush2.msra.mxu0 %v672
        %809 = vmatprep.subr.mxu0 %v669
        %810 = vmatpush2.msra.mxu0 %v668
        %811 = vmatprep.subr.mxu0 %v665
        %812 = vmatpush2.msra.mxu0 %v664
        %813 = vmatprep.subr.mxu0 %v661
        %814 = vmatpush2.msra.mxu0 %v660
        %815 = vmatprep.subr.mxu0 %v657
        %816 = vmatpush2.msra.mxu0 %v656
        %817 = vmatprep.subr.mxu0 %v653
        %818 = vmatpush2.msra.mxu0 %v652
        %819 = vmatprep.subr.mxu0 %v649
        %820 = vmatpush2.msra.mxu0 %v648
        %821 = vmatprep.subr.mxu0 %v645
        %822 = vmatpush2.msra.mxu0 %v644
        %823 = vmatprep.subr.mxu0 %v641
        %824 = vmatpush2.msra.mxu0 %v640
        %825 = vmatprep.subr.mxu0 %v637
        %826 = vmatpush2.msra.mxu0 %v636
        %827 = vmatprep.subr.mxu0 %v633
        %828 = vmatpush2.msra.mxu0 %v632
        %829 = vmatprep.subr.mxu0 %v629
        %830 = vmatpush2.msra.mxu0 %v628
        %831 = vmatprep.subr.mxu0 %v625
        %832 = vmatpush2.msra.mxu0 %v624
        %833 = vmatprep.subr.mxu0 %v621
        %834 = vmatpush2.msra.mxu0 %v620
        %835 = vmatprep.subr.mxu0 %v617
        %836 = vmatpush2.msra.mxu0 %v616
        %837 = vmatprep.mubr.f32.mxu0 %v697
        %838 = vmatmul.mubr.f32.gmra.mxu0 %v695
        %v839 = vpop.f32.mrf.mxu0
        %v840 = vadd.f32 %v769, %v839
        %v841 = vpop.f32.mrf.mxu0
        %v842 = vadd.f32 %v771, %v841
        %843 = vdwg.mxu0
        %844 = vmatprep.subr.mxu0 %v487
        %845 = vmatpush1.msra.mxu0 %v486
        %846 = vmatprep.subr.mxu0 %v483
        %847 = vmatpush1.msra.mxu0 %v482
        %848 = vmatprep.subr.mxu0 %v479
        %849 = vmatpush1.msra.mxu0 %v478
        %850 = vmatprep.subr.mxu0 %v475
        %851 = vmatpush1.msra.mxu0 %v474
        %852 = vmatprep.subr.mxu0 %v471
        %853 = vmatpush1.msra.mxu0 %v470
        %854 = vmatprep.subr.mxu0 %v467
        %855 = vmatpush1.msra.mxu0 %v466
        %856 = vmatprep.subr.mxu0 %v463
        %857 = vmatpush1.msra.mxu0 %v462
        %858 = vmatprep.subr.mxu0 %v459
        %859 = vmatpush1.msra.mxu0 %v458
        %860 = vmatprep.subr.mxu0 %v455
        %861 = vmatpush1.msra.mxu0 %v454
        %862 = vmatprep.subr.mxu0 %v451
        %863 = vmatpush1.msra.mxu0 %v450
        %864 = vmatprep.subr.mxu0 %v447
        %865 = vmatpush1.msra.mxu0 %v446
        %866 = vmatprep.subr.mxu0 %v443
        %867 = vmatpush1.msra.mxu0 %v442
        %868 = vmatprep.subr.mxu0 %v439
        %869 = vmatpush1.msra.mxu0 %v438
        %870 = vmatprep.subr.mxu0 %v435
        %871 = vmatpush1.msra.mxu0 %v434
        %872 = vmatprep.subr.mxu0 %v431
        %873 = vmatpush1.msra.mxu0 %v430
        %874 = vmatprep.subr.mxu0 %v427
        %875 = vmatpush1.msra.mxu0 %v426
        %876 = vmatprep.subr.mxu0 %v551
        %877 = vmatpush2.msra.mxu0 %v550
        %878 = vmatprep.subr.mxu0 %v547
        %879 = vmatpush2.msra.mxu0 %v546
        %880 = vmatprep.subr.mxu0 %v543
        %881 = vmatpush2.msra.mxu0 %v542
        %882 = vmatprep.subr.mxu0 %v539
        %883 = vmatpush2.msra.mxu0 %v538
        %884 = vmatprep.subr.mxu0 %v535
        %885 = vmatpush2.msra.mxu0 %v534
        %886 = vmatprep.subr.mxu0 %v531
        %887 = vmatpush2.msra.mxu0 %v530
        %888 = vmatprep.subr.mxu0 %v527
        %889 = vmatpush2.msra.mxu0 %v526
        %890 = vmatprep.subr.mxu0 %v523
        %891 = vmatpush2.msra.mxu0 %v522
        %892 = vmatprep.subr.mxu0 %v519
        %893 = vmatpush2.msra.mxu0 %v518
        %894 = vmatprep.subr.mxu0 %v515
        %895 = vmatpush2.msra.mxu0 %v514
        %896 = vmatprep.subr.mxu0 %v511
        %897 = vmatpush2.msra.mxu0 %v510
        %898 = vmatprep.subr.mxu0 %v507
        %899 = vmatpush2.msra.mxu0 %v506
        %900 = vmatprep.subr.mxu0 %v503
        %901 = vmatpush2.msra.mxu0 %v502
        %902 = vmatprep.subr.mxu0 %v499
        %903 = vmatpush2.msra.mxu0 %v498
        %904 = vmatprep.subr.mxu0 %v495
        %905 = vmatpush2.msra.mxu0 %v494
        %906 = vmatprep.subr.mxu0 %v491
        %907 = vmatpush2.msra.mxu0 %v490
        %908 = vmatprep.mubr.f32.mxu0 %v696
        %909 = vmatmul.mubr.f32.gmra.mxu0 %v688
        %v910 = vpop.f32.mrf.mxu0
        %v911 = vadd.f32 0.0, %v910
        %v912 = vpop.f32.mrf.mxu0
        %v913 = vadd.f32 0.0, %v912
        %914 = vdwg.mxu0
        %915 = vmatprep.subr.mxu0 %v615
        %916 = vmatpush1.msra.mxu0 %v614
        %917 = vmatprep.subr.mxu0 %v611
        %918 = vmatpush1.msra.mxu0 %v610
        %919 = vmatprep.subr.mxu0 %v607
        %920 = vmatpush1.msra.mxu0 %v606
        %921 = vmatprep.subr.mxu0 %v603
        %922 = vmatpush1.msra.mxu0 %v602
        %923 = vmatprep.subr.mxu0 %v599
        %924 = vmatpush1.msra.mxu0 %v598
        %925 = vmatprep.subr.mxu0 %v595
        %926 = vmatpush1.msra.mxu0 %v594
        %927 = vmatprep.subr.mxu0 %v591
        %928 = vmatpush1.msra.mxu0 %v590
        %929 = vmatprep.subr.mxu0 %v587
        %930 = vmatpush1.msra.mxu0 %v586
        %931 = vmatprep.subr.mxu0 %v583
        %932 = vmatpush1.msra.mxu0 %v582
        %933 = vmatprep.subr.mxu0 %v579
        %934 = vmatpush1.msra.mxu0 %v578
        %935 = vmatprep.subr.mxu0 %v575
        %936 = vmatpush1.msra.mxu0 %v574
        %937 = vmatprep.subr.mxu0 %v571
        %938 = vmatpush1.msra.mxu0 %v570
        %939 = vmatprep.subr.mxu0 %v567
        %940 = vmatpush1.msra.mxu0 %v566
        %941 = vmatprep.subr.mxu0 %v563
        %942 = vmatpush1.msra.mxu0 %v562
        %943 = vmatprep.subr.mxu0 %v559
        %944 = vmatpush1.msra.mxu0 %v558
        %945 = vmatprep.subr.mxu0 %v555
        %946 = vmatpush1.msra.mxu0 %v554
        %947 = vmatprep.subr.mxu0 %v679
        %948 = vmatpush2.msra.mxu0 %v678
        %949 = vmatprep.subr.mxu0 %v675
        %950 = vmatpush2.msra.mxu0 %v674
        %951 = vmatprep.subr.mxu0 %v671
        %952 = vmatpush2.msra.mxu0 %v670
        %953 = vmatprep.subr.mxu0 %v667
        %954 = vmatpush2.msra.mxu0 %v666
        %955 = vmatprep.subr.mxu0 %v663
        %956 = vmatpush2.msra.mxu0 %v662
        %957 = vmatprep.subr.mxu0 %v659
        %958 = vmatpush2.msra.mxu0 %v658
        %959 = vmatprep.subr.mxu0 %v655
        %960 = vmatpush2.msra.mxu0 %v654
        %961 = vmatprep.subr.mxu0 %v651
        %962 = vmatpush2.msra.mxu0 %v650
        %963 = vmatprep.subr.mxu0 %v647
        %964 = vmatpush2.msra.mxu0 %v646
        %965 = vmatprep.subr.mxu0 %v643
        %966 = vmatpush2.msra.mxu0 %v642
        %967 = vmatprep.subr.mxu0 %v639
        %968 = vmatpush2.msra.mxu0 %v638
        %969 = vmatprep.subr.mxu0 %v635
        %970 = vmatpush2.msra.mxu0 %v634
        %971 = vmatprep.subr.mxu0 %v631
        %972 = vmatpush2.msra.mxu0 %v630
        %973 = vmatprep.subr.mxu0 %v627
        %974 = vmatpush2.msra.mxu0 %v626
        %975 = vmatprep.subr.mxu0 %v623
        %976 = vmatpush2.msra.mxu0 %v622
        %977 = vmatprep.subr.mxu0 %v619
        %978 = vmatpush2.msra.mxu0 %v618
        %979 = vmatprep.mubr.f32.mxu0 %v697
        %980 = vmatmul.mubr.f32.gmra.mxu0 %v695
        %v981 = vpop.f32.mrf.mxu0
        %v982 = vadd.f32 %v911, %v981
        %v983 = vpop.f32.mrf.mxu0
        %v984 = vadd.f32 %v913, %v983
        %985 = vdwg.mxu0
        %vm986 = vcmask 1041408
        %v987 = vsel %vm986, %v840, 0.0
        %v988 = vrot.slane %v987, 4
        %v989 = vadd.f32 %v987, %v988
        %v990 = vrot.slane %v989, 2
        %v991 = vadd.f32 %v989, %v990
        %v992 = vrot.slane %v991, 1
        %v993 = vadd.f32 %v991, %v992
        %v994 = vsel %vm986, %v842, 0.0
        %v995 = vrot.slane %v994, 4
        %v996 = vadd.f32 %v994, %v995
        %v997 = vrot.slane %v996, 2
        %v998 = vadd.f32 %v996, %v997
        %v999 = vrot.slane %v998, 1
        %v1000 = vadd.f32 %v998, %v999
        %v1001 = vsel %vm986, %v982, 0.0
        %v1002 = vrot.slane %v1001, 4
        %v1003 = vadd.f32 %v1001, %v1002
        %v1004 = vrot.slane %v1003, 2
        %v1005 = vadd.f32 %v1003, %v1004
        %v1006 = vrot.slane %v1005, 1
        %v1007 = vadd.f32 %v1005, %v1006
        %v1008 = vsel %vm986, %v984, 0.0
        %v1009 = vrot.slane %v1008, 4
        %v1010 = vadd.f32 %v1008, %v1009
        %v1011 = vrot.slane %v1010, 2
        %v1012 = vadd.f32 %v1010, %v1011
        %v1013 = vrot.slane %v1012, 1
        %v1014 = vadd.f32 %v1012, %v1013
        %v1015 = vrcp.pop 2.0
        %v1016 = vmul.f32 %v993, %v1015
        %v1017 = vmul.f32 %v1000, %v1015
        %v1018 = vmul.f32 %v1007, %v1015
        %v1019 = vmul.f32 %v1014, %v1015
        %v1020 = vmul.f32 %v840, %v840
        %v1021 = vmul.f32 %v842, %v842
        %v1022 = vmul.f32 %v982, %v982
        %v1023 = vmul.f32 %v984, %v984
        %v1024 = vsel %vm986, %v1020, 0.0
        %v1025 = vrot.slane %v1024, 4
        %v1026 = vadd.f32 %v1024, %v1025
        %v1027 = vrot.slane %v1026, 2
        %v1028 = vadd.f32 %v1026, %v1027
        %v1029 = vrot.slane %v1028, 1
        %v1030 = vadd.f32 %v1028, %v1029
        %v1031 = vsel %vm986, %v1021, 0.0
        %v1032 = vrot.slane %v1031, 4
        %v1033 = vadd.f32 %v1031, %v1032
        %v1034 = vrot.slane %v1033, 2
        %v1035 = vadd.f32 %v1033, %v1034
        %v1036 = vrot.slane %v1035, 1
        %v1037 = vadd.f32 %v1035, %v1036
        %v1038 = vsel %vm986, %v1022, 0.0
        %v1039 = vrot.slane %v1038, 4
        %v1040 = vadd.f32 %v1038, %v1039
        %v1041 = vrot.slane %v1040, 2
        %v1042 = vadd.f32 %v1040, %v1041
        %v1043 = vrot.slane %v1042, 1
        %v1044 = vadd.f32 %v1042, %v1043
        %v1045 = vsel %vm986, %v1023, 0.0
        %v1046 = vrot.slane %v1045, 4
        %v1047 = vadd.f32 %v1045, %v1046
        %v1048 = vrot.slane %v1047, 2
        %v1049 = vadd.f32 %v1047, %v1048
        %v1050 = vrot.slane %v1049, 1
        %v1051 = vadd.f32 %v1049, %v1050
        %v1052 = vmul.f32 %v1030, %v1015
        %v1053 = vmul.f32 %v1037, %v1015
        %v1054 = vmul.f32 %v1044, %v1015
        %v1055 = vmul.f32 %v1051, %v1015
        %v1056 = vmul.f32 %v1016, %v1016
        %v1057 = vmul.f32 %v1017, %v1017
        %v1058 = vmul.f32 %v1018, %v1018
        %v1059 = vmul.f32 %v1019, %v1019
        %v1060 = vsub.f32 %v1052, %v1056
        %v1061 = vsub.f32 %v1053, %v1057
        %v1062 = vsub.f32 %v1054, %v1058
        %v1063 = vsub.f32 %v1055, %v1059
        %v1064 = vsub.f32 %v840, %v1016
        %v1065 = vsub.f32 %v842, %v1017
        %v1066 = vsub.f32 %v982, %v1018
        %v1067 = vsub.f32 %v984, %v1019
        %v1068 = vadd.f32 %v1060, 1e-05
        %v1069 = vadd.f32 %v1061, 1e-05
        %v1070 = vadd.f32 %v1062, 1e-05
        %v1071 = vadd.f32 %v1063, 1e-05
        %v1072 = vrsqrt.pop %v1068
        %v1073 = vrsqrt.pop %v1069
        %v1074 = vrsqrt.pop %v1070
        %v1075 = vrsqrt.pop %v1071
        %v1076 = vmul.f32 %v1064, %v1072
        %v1077 = vmul.f32 %v1065, %v1073
        %v1078 = vmul.f32 %v1066, %v1074
        %v1079 = vmul.f32 %v1067, %v1075
        %v1080 = vld [vmem:[%s2] sm:$0xf]
        %v1082 = vlaneseq
        %v1083 = vshrl.u32 %v1082, 7
        %v1084 = vsub.s32 0, %v1083
        %v1085 = vrot.slane %v1080, %v1084
        %v1086 = vlaneseq
        %v1087 = vshrl.u32 %v1086, 7
        %v1088 = vsub.s32 1, %v1087
        %v1089 = vrot.slane %v1080, %v1088
        %v1090 = vlaneseq
        %v1091 = vshrl.u32 %v1090, 7
        %v1092 = vsub.s32 2, %v1091
        %v1093 = vrot.slane %v1080, %v1092
        %v1094 = vlaneseq
        %v1095 = vshrl.u32 %v1094, 7
        %v1096 = vsub.s32 3, %v1095
        %v1097 = vrot.slane %v1080, %v1096
        %v1102 = vmul.f32 %v1076, %v1085
        %v1103 = vmul.f32 %v1077, %v1089
        %v1104 = vmul.f32 %v1078, %v1093
        %v1105 = vmul.f32 %v1079, %v1097
        %v1106 = vld [vmem:[%s3] sm:$0xf]
        %v1108 = vlaneseq
        %v1109 = vshrl.u32 %v1108, 7
        %v1110 = vsub.s32 0, %v1109
        %v1111 = vrot.slane %v1106, %v1110
        %v1112 = vlaneseq
        %v1113 = vshrl.u32 %v1112, 7
        %v1114 = vsub.s32 1, %v1113
        %v1115 = vrot.slane %v1106, %v1114
        %v1116 = vlaneseq
        %v1117 = vshrl.u32 %v1116, 7
        %v1118 = vsub.s32 2, %v1117
        %v1119 = vrot.slane %v1106, %v1118
        %v1120 = vlaneseq
        %v1121 = vshrl.u32 %v1120, 7
        %v1122 = vsub.s32 3, %v1121
        %v1123 = vrot.slane %v1106, %v1122
        %v1128 = vadd.f32 %v1102, %v1111
        %v1129 = vadd.f32 %v1103, %v1115
        %v1130 = vadd.f32 %v1104, %v1119
        %v1131 = vadd.f32 %v1105, %v1123
        %v1132 = vmul.f32 %v1128, 0.5
        %v1133 = vmul.f32 %v1129, 0.5
        %v1134 = vmul.f32 %v1130, 0.5
        %v1135 = vmul.f32 %v1131, 0.5
        %v1136 = vmul.f32 %v1128, 0.70710677
        %v1137 = vmul.f32 %v1129, 0.70710677
        %v1138 = vmul.f32 %v1130, 0.70710677
        %v1139 = vmul.f32 %v1131, 0.70710677
        %v1140 = verf.f32.pop %v1136
        %v1141 = verf.f32.pop %v1137
        %v1142 = verf.f32.pop %v1138
        %v1143 = verf.f32.pop %v1139
        %v1144 = vadd.f32 %v1140, 1.0
        %v1145 = vadd.f32 %v1141, 1.0
        %v1146 = vadd.f32 %v1142, 1.0
        %v1147 = vadd.f32 %v1143, 1.0
        %v1148 = vmul.f32 %v1132, %v1144
        %v1149 = vmul.f32 %v1133, %v1145
        %v1150 = vmul.f32 %v1134, %v1146
        %v1151 = vmul.f32 %v1135, %v1147
        %v1152 = vld [vmem:[%s4] sm:$0xff]
        %v1153 = vld [vmem:[%s4 + $0x8] sm:$0xff]
        %v1154 = vld [vmem:[%s4 + $0x10] sm:$0xff]
        %v1155 = vld [vmem:[%s4 + $0x18] sm:$0xff]
        %v1156 = vld [vmem:[%s4 + $0x20] sm:$0xff]
        %v1157 = vld [vmem:[%s4 + $0x28] sm:$0xff]
        %v1158 = vld [vmem:[%s4 + $0x30] sm:$0xff]
        %v1159 = vld [vmem:[%s4 + $0x38] sm:$0xff]
        %v1160 = vld [vmem:[%s4 + $0x40] sm:$0xff]
        %v1161 = vld [vmem:[%s4 + $0x48] sm:$0xff]
        %v1162 = vld [vmem:[%s4 + $0x50] sm:$0xff]
        %v1163 = vld [vmem:[%s4 + $0x58] sm:$0xff]
        %v1164 = vld [vmem:[%s4 + $0x60] sm:$0xff]
        %v1165 = vld [vmem:[%s4 + $0x68] sm:$0xff]
        %v1166 = vld [vmem:[%s4 + $0x70] sm:$0xff]
        %v1167 = vld [vmem:[%s4 + $0x78] sm:$0xff]
        %v1168 = vld [vmem:[%s4 + $0x80] sm:$0xff]
        %v1169 = vld [vmem:[%s4 + $0x88] sm:$0xff]
        %v1170 = vld [vmem:[%s4 + $0x90] sm:$0xff]
        %v1171 = vld [vmem:[%s4 + $0x98] sm:$0xff]
        %v1172 = vld [vmem:[%s4 + $0xa0] sm:$0xff]
        %v1173 = vld [vmem:[%s4 + $0xa8] sm:$0xff]
        %v1174 = vld [vmem:[%s4 + $0xb0] sm:$0xff]
        %v1175 = vld [vmem:[%s4 + $0xb8] sm:$0xff]
        %v1176 = vld [vmem:[%s4 + $0xc0] sm:$0xff]
        %v1177 = vld [vmem:[%s4 + $0xc8] sm:$0xff]
        %v1178 = vld [vmem:[%s4 + $0xd0] sm:$0xff]
        %v1179 = vld [vmem:[%s4 + $0xd8] sm:$0xff]
        %v1180 = vld [vmem:[%s4 + $0xe0] sm:$0xff]
        %v1181 = vld [vmem:[%s4 + $0xe8] sm:$0xff]
        %v1182 = vld [vmem:[%s4 + $0xf0] sm:$0xff]
        %v1183 = vld [vmem:[%s4 + $0xf8] sm:$0xff]
        %v1184 = vld [vmem:[%s4 + $0x100] sm:$0xff]
        %v1185 = vld [vmem:[%s4 + $0x108] sm:$0xff]
        %v1186 = vld [vmem:[%s4 + $0x110] sm:$0xff]
        %v1187 = vld [vmem:[%s4 + $0x118] sm:$0xff]
        %v1188 = vld [vmem:[%s4 + $0x120] sm:$0xff]
        %v1189 = vld [vmem:[%s4 + $0x128] sm:$0xff]
        %v1190 = vld [vmem:[%s4 + $0x130] sm:$0xff]
        %v1191 = vld [vmem:[%s4 + $0x138] sm:$0xff]
        %v1192 = vld [vmem:[%s4 + $0x140] sm:$0xff]
        %v1193 = vld [vmem:[%s4 + $0x148] sm:$0xff]
        %v1194 = vld [vmem:[%s4 + $0x150] sm:$0xff]
        %v1195 = vld [vmem:[%s4 + $0x158] sm:$0xff]
        %v1196 = vld [vmem:[%s4 + $0x160] sm:$0xff]
        %v1197 = vld [vmem:[%s4 + $0x168] sm:$0xff]
        %v1198 = vld [vmem:[%s4 + $0x170] sm:$0xff]
        %v1199 = vld [vmem:[%s4 + $0x178] sm:$0xff]
        %v1200 = vld [vmem:[%s4 + $0x180] sm:$0xff]
        %v1201 = vld [vmem:[%s4 + $0x188] sm:$0xff]
        %v1202 = vld [vmem:[%s4 + $0x190] sm:$0xff]
        %v1203 = vld [vmem:[%s4 + $0x198] sm:$0xff]
        %v1204 = vld [vmem:[%s4 + $0x1a0] sm:$0xff]
        %v1205 = vld [vmem:[%s4 + $0x1a8] sm:$0xff]
        %v1206 = vld [vmem:[%s4 + $0x1b0] sm:$0xff]
        %v1207 = vld [vmem:[%s4 + $0x1b8] sm:$0xff]
        %v1208 = vld [vmem:[%s4 + $0x1c0] sm:$0xff]
        %v1209 = vld [vmem:[%s4 + $0x1c8] sm:$0xff]
        %v1210 = vld [vmem:[%s4 + $0x1d0] sm:$0xff]
        %v1211 = vld [vmem:[%s4 + $0x1d8] sm:$0xff]
        %v1212 = vld [vmem:[%s4 + $0x1e0] sm:$0xff]
        %v1213 = vld [vmem:[%s4 + $0x1e8] sm:$0xff]
        %v1214 = vld [vmem:[%s4 + $0x1f0] sm:$0xff]
        %v1215 = vld [vmem:[%s4 + $0x1f8] sm:$0xff]
        %v1216 = vld [vmem:[%s4 + $0x200] sm:$0xff]
        %v1217 = vld [vmem:[%s4 + $0x208] sm:$0xff]
        %v1218 = vld [vmem:[%s4 + $0x210] sm:$0xff]
        %v1219 = vld [vmem:[%s4 + $0x218] sm:$0xff]
        %v1220 = vld [vmem:[%s4 + $0x220] sm:$0xff]
        %v1221 = vld [vmem:[%s4 + $0x228] sm:$0xff]
        %v1222 = vld [vmem:[%s4 + $0x230] sm:$0xff]
        %v1223 = vld [vmem:[%s4 + $0x238] sm:$0xff]
        %v1224 = vld [vmem:[%s4 + $0x240] sm:$0xff]
        %v1225 = vld [vmem:[%s4 + $0x248] sm:$0xff]
        %v1226 = vld [vmem:[%s4 + $0x250] sm:$0xff]
        %v1227 = vld [vmem:[%s4 + $0x258] sm:$0xff]
        %v1228 = vld [vmem:[%s4 + $0x260] sm:$0xff]
        %v1229 = vld [vmem:[%s4 + $0x268] sm:$0xff]
        %v1230 = vld [vmem:[%s4 + $0x270] sm:$0xff]
        %v1231 = vld [vmem:[%s4 + $0x278] sm:$0xff]
        %v1232 = vld [vmem:[%s4 + $0x280] sm:$0xff]
        %v1233 = vld [vmem:[%s4 + $0x288] sm:$0xff]
        %v1234 = vld [vmem:[%s4 + $0x290] sm:$0xff]
        %v1235 = vld [vmem:[%s4 + $0x298] sm:$0xff]
        %v1236 = vld [vmem:[%s4 + $0x2a0] sm:$0xff]
        %v1237 = vld [vmem:[%s4 + $0x2a8] sm:$0xff]
        %v1238 = vld [vmem:[%s4 + $0x2b0] sm:$0xff]
        %v1239 = vld [vmem:[%s4 + $0x2b8] sm:$0xff]
        %v1240 = vld [vmem:[%s4 + $0x2c0] sm:$0xff]
        %v1241 = vld [vmem:[%s4 + $0x2c8] sm:$0xff]
        %v1242 = vld [vmem:[%s4 + $0x2d0] sm:$0xff]
        %v1243 = vld [vmem:[%s4 + $0x2d8] sm:$0xff]
        %v1244 = vld [vmem:[%s4 + $0x2e0] sm:$0xff]
        %v1245 = vld [vmem:[%s4 + $0x2e8] sm:$0xff]
        %v1246 = vld [vmem:[%s4 + $0x2f0] sm:$0xff]
        %v1247 = vld [vmem:[%s4 + $0x2f8] sm:$0xff]
        %v1248 = vld [vmem:[%s4 + $0x300] sm:$0xff]
        %v1249 = vld [vmem:[%s4 + $0x308] sm:$0xff]
        %v1250 = vld [vmem:[%s4 + $0x310] sm:$0xff]
        %v1251 = vld [vmem:[%s4 + $0x318] sm:$0xff]
        %v1252 = vld [vmem:[%s4 + $0x320] sm:$0xff]
        %v1253 = vld [vmem:[%s4 + $0x328] sm:$0xff]
        %v1254 = vld [vmem:[%s4 + $0x330] sm:$0xff]
        %v1255 = vld [vmem:[%s4 + $0x338] sm:$0xff]
        %v1256 = vld [vmem:[%s4 + $0x340] sm:$0xff]
        %v1257 = vld [vmem:[%s4 + $0x348] sm:$0xff]
        %v1258 = vld [vmem:[%s4 + $0x350] sm:$0xff]
        %v1259 = vld [vmem:[%s4 + $0x358] sm:$0xff]
        %v1260 = vld [vmem:[%s4 + $0x360] sm:$0xff]
        %v1261 = vld [vmem:[%s4 + $0x368] sm:$0xff]
        %v1262 = vld [vmem:[%s4 + $0x370] sm:$0xff]
        %v1263 = vld [vmem:[%s4 + $0x378] sm:$0xff]
        %v1264 = vld [vmem:[%s4 + $0x380] sm:$0xff]
        %v1265 = vld [vmem:[%s4 + $0x388] sm:$0xff]
        %v1266 = vld [vmem:[%s4 + $0x390] sm:$0xff]
        %v1267 = vld [vmem:[%s4 + $0x398] sm:$0xff]
        %v1268 = vld [vmem:[%s4 + $0x3a0] sm:$0xff]
        %v1269 = vld [vmem:[%s4 + $0x3a8] sm:$0xff]
        %v1270 = vld [vmem:[%s4 + $0x3b0] sm:$0xff]
        %v1271 = vld [vmem:[%s4 + $0x3b8] sm:$0xff]
        %v1272 = vld [vmem:[%s4 + $0x3c0] sm:$0xff]
        %v1273 = vld [vmem:[%s4 + $0x3c8] sm:$0xff]
        %v1274 = vld [vmem:[%s4 + $0x3d0] sm:$0xff]
        %v1275 = vld [vmem:[%s4 + $0x3d8] sm:$0xff]
        %v1276 = vld [vmem:[%s4 + $0x3e0] sm:$0xff]
        %v1277 = vld [vmem:[%s4 + $0x3e8] sm:$0xff]
        %v1278 = vld [vmem:[%s4 + $0x3f0] sm:$0xff]
        %v1279 = vld [vmem:[%s4 + $0x3f8] sm:$0xff]
        %v1280 = vld [vmem:[%s5] sm:$0x3]
        %v1282 = vlaneseq
        %v1283 = vshrl.u32 %v1282, 7
        %v1284 = vsub.s32 0, %v1283
        %v1285 = vrot.slane %v1280, %v1284
        %v1286 = vlaneseq
        %v1287 = vshrl.u32 %v1286, 7
        %v1288 = vsub.s32 1, %v1287
        %v1289 = vrot.slane %v1280, %v1288
        %1292 = vmatprep.subr.mxu0 %v1183
        %1293 = vmatpush1.msra.mxu0 %v1182
        %1294 = vmatprep.subr.mxu0 %v1181
        %1295 = vmatpush1.msra.mxu0 %v1180
        %1296 = vmatprep.subr.mxu0 %v1179
        %1297 = vmatpush1.msra.mxu0 %v1178
        %1298 = vmatprep.subr.mxu0 %v1177
        %1299 = vmatpush1.msra.mxu0 %v1176
        %1300 = vmatprep.subr.mxu0 %v1175
        %1301 = vmatpush1.msra.mxu0 %v1174
        %1302 = vmatprep.subr.mxu0 %v1173
        %1303 = vmatpush1.msra.mxu0 %v1172
        %1304 = vmatprep.subr.mxu0 %v1171
        %1305 = vmatpush1.msra.mxu0 %v1170
        %1306 = vmatprep.subr.mxu0 %v1169
        %1307 = vmatpush1.msra.mxu0 %v1168
        %1308 = vmatprep.subr.mxu0 %v1167
        %1309 = vmatpush1.msra.mxu0 %v1166
        %1310 = vmatprep.subr.mxu0 %v1165
        %1311 = vmatpush1.msra.mxu0 %v1164
        %1312 = vmatprep.subr.mxu0 %v1163
        %1313 = vmatpush1.msra.mxu0 %v1162
        %1314 = vmatprep.subr.mxu0 %v1161
        %1315 = vmatpush1.msra.mxu0 %v1160
        %1316 = vmatprep.subr.mxu0 %v1159
        %1317 = vmatpush1.msra.mxu0 %v1158
        %1318 = vmatprep.subr.mxu0 %v1157
        %1319 = vmatpush1.msra.mxu0 %v1156
        %1320 = vmatprep.subr.mxu0 %v1155
        %1321 = vmatpush1.msra.mxu0 %v1154
        %1322 = vmatprep.subr.mxu0 %v1153
        %1323 = vmatpush1.msra.mxu0 %v1152
        %1324 = vmatprep.subr.mxu0 %v1215
        %1325 = vmatpush2.msra.mxu0 %v1214
        %1326 = vmatprep.subr.mxu0 %v1213
        %1327 = vmatpush2.msra.mxu0 %v1212
        %1328 = vmatprep.subr.mxu0 %v1211
        %1329 = vmatpush2.msra.mxu0 %v1210
        %1330 = vmatprep.subr.mxu0 %v1209
        %1331 = vmatpush2.msra.mxu0 %v1208
        %1332 = vmatprep.subr.mxu0 %v1207
        %1333 = vmatpush2.msra.mxu0 %v1206
        %1334 = vmatprep.subr.mxu0 %v1205
        %1335 = vmatpush2.msra.mxu0 %v1204
        %1336 = vmatprep.subr.mxu0 %v1203
        %1337 = vmatpush2.msra.mxu0 %v1202
        %1338 = vmatprep.subr.mxu0 %v1201
        %1339 = vmatpush2.msra.mxu0 %v1200
        %1340 = vmatprep.subr.mxu0 %v1199
        %1341 = vmatpush2.msra.mxu0 %v1198
        %1342 = vmatprep.subr.mxu0 %v1197
        %1343 = vmatpush2.msra.mxu0 %v1196
        %1344 = vmatprep.subr.mxu0 %v1195
        %1345 = vmatpush2.msra.mxu0 %v1194
        %1346 = vmatprep.subr.mxu0 %v1193
        %1347 = vmatpush2.msra.mxu0 %v1192
        %1348 = vmatprep.subr.mxu0 %v1191
        %1349 = vmatpush2.msra.mxu0 %v1190
        %1350 = vmatprep.subr.mxu0 %v1189
        %1351 = vmatpush2.msra.mxu0 %v1188
        %1352 = vmatprep.subr.mxu0 %v1187
        %1353 = vmatpush2.msra.mxu0 %v1186
        %1354 = vmatprep.subr.mxu0 %v1185
        %1355 = vmatpush2.msra.mxu0 %v1184
        %1356 = vmatprep.mubr.f32.mxu0 %v1149
        %1357 = vmatmul.mubr.f32.gmra.mxu0 %v1148
        %v1358 = vpop.f32.mrf.mxu0
        %v1359 = vadd.f32 %v1285, %v1358
        %v1360 = vpop.f32.mrf.mxu0
        %v1361 = vadd.f32 %v1289, %v1360
        %1362 = vdwg.mxu0
        %1363 = vmatprep.subr.mxu0 %v1247
        %1364 = vmatpush1.msra.mxu0 %v1246
        %1365 = vmatprep.subr.mxu0 %v1245
        %1366 = vmatpush1.msra.mxu0 %v1244
        %1367 = vmatprep.subr.mxu0 %v1243
        %1368 = vmatpush1.msra.mxu0 %v1242
        %1369 = vmatprep.subr.mxu0 %v1241
        %1370 = vmatpush1.msra.mxu0 %v1240
        %1371 = vmatprep.subr.mxu0 %v1239
        %1372 = vmatpush1.msra.mxu0 %v1238
        %1373 = vmatprep.subr.mxu0 %v1237
        %1374 = vmatpush1.msra.mxu0 %v1236
        %1375 = vmatprep.subr.mxu0 %v1235
        %1376 = vmatpush1.msra.mxu0 %v1234
        %1377 = vmatprep.subr.mxu0 %v1233
        %1378 = vmatpush1.msra.mxu0 %v1232
        %1379 = vmatprep.subr.mxu0 %v1231
        %1380 = vmatpush1.msra.mxu0 %v1230
        %1381 = vmatprep.subr.mxu0 %v1229
        %1382 = vmatpush1.msra.mxu0 %v1228
        %1383 = vmatprep.subr.mxu0 %v1227
        %1384 = vmatpush1.msra.mxu0 %v1226
        %1385 = vmatprep.subr.mxu0 %v1225
        %1386 = vmatpush1.msra.mxu0 %v1224
        %1387 = vmatprep.subr.mxu0 %v1223
        %1388 = vmatpush1.msra.mxu0 %v1222
        %1389 = vmatprep.subr.mxu0 %v1221
        %1390 = vmatpush1.msra.mxu0 %v1220
        %1391 = vmatprep.subr.mxu0 %v1219
        %1392 = vmatpush1.msra.mxu0 %v1218
        %1393 = vmatprep.subr.mxu0 %v1217
        %1394 = vmatpush1.msra.mxu0 %v1216
        %1395 = vmatprep.subr.mxu0 %v1279
        %1396 = vmatpush2.msra.mxu0 %v1278
        %1397 = vmatprep.subr.mxu0 %v1277
        %1398 = vmatpush2.msra.mxu0 %v1276
        %1399 = vmatprep.subr.mxu0 %v1275
        %1400 = vmatpush2.msra.mxu0 %v1274
        %1401 = vmatprep.subr.mxu0 %v1273
        %1402 = vmatpush2.msra.mxu0 %v1272
        %1403 = vmatprep.subr.mxu0 %v1271
        %1404 = vmatpush2.msra.mxu0 %v1270
        %1405 = vmatprep.subr.mxu0 %v1269
        %1406 = vmatpush2.msra.mxu0 %v1268
        %1407 = vmatprep.subr.mxu0 %v1267
        %1408 = vmatpush2.msra.mxu0 %v1266
        %1409 = vmatprep.subr.mxu0 %v1265
        %1410 = vmatpush2.msra.mxu0 %v1264
        %1411 = vmatprep.subr.mxu0 %v1263
        %1412 = vmatpush2.msra.mxu0 %v1262
        %1413 = vmatprep.subr.mxu0 %v1261
        %1414 = vmatpush2.msra.mxu0 %v1260
        %1415 = vmatprep.subr.mxu0 %v1259
        %1416 = vmatpush2.msra.mxu0 %v1258
        %1417 = vmatprep.subr.mxu0 %v1257
        %1418 = vmatpush2.msra.mxu0 %v1256
        %1419 = vmatprep.subr.mxu0 %v1255
        %1420 = vmatpush2.msra.mxu0 %v1254
        %1421 = vmatprep.subr.mxu0 %v1253
        %1422 = vmatpush2.msra.mxu0 %v1252
        %1423 = vmatprep.subr.mxu0 %v1251
        %1424 = vmatpush2.msra.mxu0 %v1250
        %1425 = vmatprep.subr.mxu0 %v1249
        %1426 = vmatpush2.msra.mxu0 %v1248
        %1427 = vmatprep.mubr.f32.mxu0 %v1151
        %1428 = vmatmul.mubr.f32.gmra.mxu0 %v1150
        %v1429 = vpop.f32.mrf.mxu0
        %v1430 = vadd.f32 %v1359, %v1429
        %v1431 = vpop.f32.mrf.mxu0
        %v1432 = vadd.f32 %v1361, %v1431
        %1433 = vdwg.mxu0
        %v1434 = vsel %vm986, %v1430, 0.0
        %v1435 = vrot.slane %v1434, 4
        %v1436 = vadd.f32 %v1434, %v1435
        %v1437 = vrot.slane %v1436, 2
        %v1438 = vadd.f32 %v1436, %v1437
        %v1439 = vrot.slane %v1438, 1
        %v1440 = vadd.f32 %v1438, %v1439
        %v1441 = vsel %vm986, %v1432, 0.0
        %v1442 = vrot.slane %v1441, 4
        %v1443 = vadd.f32 %v1441, %v1442
        %v1444 = vrot.slane %v1443, 2
        %v1445 = vadd.f32 %v1443, %v1444
        %v1446 = vrot.slane %v1445, 1
        %v1447 = vadd.f32 %v1445, %v1446
        %v1448 = vmul.f32 %v1440, %v1015
        %v1449 = vmul.f32 %v1447, %v1015
        %v1450 = vmul.f32 %v1430, %v1430
        %v1451 = vmul.f32 %v1432, %v1432
        %v1452 = vsel %vm986, %v1450, 0.0
        %v1453 = vrot.slane %v1452, 4
        %v1454 = vadd.f32 %v1452, %v1453
        %v1455 = vrot.slane %v1454, 2
        %v1456 = vadd.f32 %v1454, %v1455
        %v1457 = vrot.slane %v1456, 1
        %v1458 = vadd.f32 %v1456, %v1457
        %v1459 = vsel %vm986, %v1451, 0.0
        %v1460 = vrot.slane %v1459, 4
        %v1461 = vadd.f32 %v1459, %v1460
        %v1462 = vrot.slane %v1461, 2
        %v1463 = vadd.f32 %v1461, %v1462
        %v1464 = vrot.slane %v1463, 1
        %v1465 = vadd.f32 %v1463, %v1464
        %v1466 = vmul.f32 %v1458, %v1015
        %v1467 = vmul.f32 %v1465, %v1015
        %v1468 = vmul.f32 %v1448, %v1448
        %v1469 = vmul.f32 %v1449, %v1449
        %v1470 = vsub.f32 %v1466, %v1468
        %v1471 = vsub.f32 %v1467, %v1469
        %v1472 = vsub.f32 %v1430, %v1448
        %v1473 = vsub.f32 %v1432, %v1449
        %v1474 = vadd.f32 %v1470, 1e-05
        %v1475 = vadd.f32 %v1471, 1e-05
        %v1476 = vrsqrt.pop %v1474
        %v1477 = vrsqrt.pop %v1475
        %v1478 = vmul.f32 %v1472, %v1476
        %v1479 = vmul.f32 %v1473, %v1477
        %v1482 = vcombine.low %v1478, %v1479
        %v1484 = vunpack.c.l.s4 1983009808
        %v1485 = vunpack.c.0.s8 %v1484
        %v1486 = vlaneseq
        %v1487 = vshrl.u32 %v1486, 7
        %v1488 = vsub.s32 %v1485, %v1487
        %v1489 = vrot.slane %v1482, %v1488
        %1491 = vst [vmem:[%s282] sm:$0xf] %v1489
      $region52: #{sim_yolov8_forward.1} parent=43 // pred_fallthru
        _
      %p1492 = scmp.lt.s32.totalorder %s21, 1
      %s1493 = scalar_select %p1492, %s21, 1
      %s1494 = smul.addr %s1493, 2
      %s1495 = smul.addr %s1494, 2
      %s1496 = scalar_lea.vmem %s6, %s1495
      // Predicated region
      $region53: #{sim_yolov8_forward.1} parent=43 // pred_check
        %p1497 = pneg %p180
      $region54: #{sim_yolov8_forward.1} parent=43 // pred_check_branch
        %1499 = sbr.rel (%p1497) target = $region56
      $region55: #{sim_yolov8_forward.1} parent=43 // pred_region
        _
      $region56: #{sim_yolov8_forward.1} parent=43 // pred_fallthru
        _
    $region44: #{sim_yolov8_forward.1} parent=5 // pred_fallthru
      _
    %p1500 = scmp.le.s32.totalorder 2, %s12
    // Predicated region
    $region57: #{sim_yolov8_forward.1} parent=5 // pred_check
      %p1501 = pneg %p1500
    $region58: #{sim_yolov8_forward.1} parent=5 // pred_check_branch
      %1503 = sbr.rel (%p1501) target = $region60
    $region59: #{sim_yolov8_forward.1} parent=5 // pred_region
      %s1504 = ssub.s32 %s12, 2
      // Predicated region
      $region61: #{sim_yolov8_forward.1} parent=59 // pred_check
        %p1505 = pneg %p186
      $region62: #{sim_yolov8_forward.1} parent=59 // pred_check_branch
        %1507 = sbr.rel (%p1505) target = $region64
      $region63: #{sim_yolov8_forward.1} parent=59 // pred_region
        %p1508 = scmp.lt.s32.totalorder %s23, 1
        %s1509 = scalar_select %p1508, %s23, 1
        %s1510 = smul.addr %s1509, 2
        %s1511 = smul.addr %s1510, 2
        %s1512 = scalar_lea.vmem %s6, %s1511
      $region64: #{sim_yolov8_forward.1} parent=59 // pred_fallthru
        _
    $region60: #{sim_yolov8_forward.1} parent=5 // pred_fallthru
      _
  $region6: #{sim_yolov8_forward.1} parent=0 // loop_footer
    %s16 = sadd.s32 1, %s12
  $region7: #{sim_yolov8_forward.1} parent=0 // loop_footer_branch
    %11 = sbr.rel target = $region3
  $region8: #{sim_yolov8_forward.1} parent=0 // loop_exit
    _

</llo_original>
